<compile_context>
chip_gen: v7x
topology: tpu7x:2x2x1
jax: 0.10.0
libtpu: 0.0.40
codegen_flags: <defaults>
</compile_context>

<pallas_src>
import functools
import math

import jax
import jax.numpy as jnp
from jax.experimental import pallas as pl
from jax.experimental.pallas import tpu as pltpu

OUT_INDEX = (2, 3, 5, 7)

# EfficientNet-B7 stage config (width_mult=2.0, depth_mult=3.1 already applied):
#   (expand_ratio, kernel, stride, Cin, Cout, num_blocks)
B7_CONFIG = [
    (1, 3, 1, 64, 32, 4),
    (6, 3, 2, 32, 48, 7),
    (6, 5, 2, 48, 80, 7),
    (6, 3, 2, 80, 160, 10),
    (6, 5, 1, 160, 224, 10),
    (6, 5, 2, 224, 384, 13),
    (6, 3, 1, 384, 640, 4),
]
STEM_CH = 64


# ----------------------------------------------------------------------------- helpers

@functools.lru_cache(maxsize=None)
def _compiler_params(dimension_semantics):
    # Right-size the scoped VMEM limit per TPU generation (v7x has only 64 MiB/TC).
    try:
        cap = int(pltpu.get_tpu_info().vmem_capacity_bytes)
    except Exception:
        cap = 64 * 1024 * 1024
    limit = min((cap * 3) // 4, 96 * 1024 * 1024)
    return pltpu.CompilerParams(dimension_semantics=dimension_semantics,
                                vmem_limit_bytes=limit)


def _bcast_spec(a):
    """Full-array block, resident across the grid (weights / small broadcasts)."""
    zeros = (0,) * a.ndim
    return pl.BlockSpec(a.shape, lambda b, _z=zeros: _z)


def _pick_row_tile(m, cap=512):
    for t in (512, 256, 128, 64, 32, 16, 8):
        if t <= min(cap, m) and m % t == 0:
            return t
    return m


def _apply_act(y, act):
    if act == "silu":
        return y * jax.nn.sigmoid(y)
    if act == "sigmoid":
        return jax.nn.sigmoid(y)
    return y


# ----------------------------------------------------------------------------- kernels

def _pw_kernel(x_ref, w_ref, s_ref, b_ref, o_ref, *, act):
    # (tm, K) bf16 @ (K, Cout) bf16 -> f32 on the MXU; folded-BN affine + act in f32.
    y = jnp.dot(x_ref[...], w_ref[...], preferred_element_type=jnp.float32)
    y = y * s_ref[...] + b_ref[...]
    o_ref[...] = _apply_act(y, act).astype(o_ref.dtype)


@functools.partial(jax.jit, static_argnames=("act",))
def pointwise(x, w, scale, bias, act):
    # Row-tiled, pipelined, megacore-parallel matmul. x:(M,K) bf16, w:(K,Cout) bf16.
    m, kdim = x.shape
    cout = w.shape[1]
    tm = _pick_row_tile(m)
    return pl.pallas_call(
        functools.partial(_pw_kernel, act=act),
        out_shape=jax.ShapeDtypeStruct((m, cout), jnp.bfloat16),
        grid=(m // tm,),
        in_specs=[pl.BlockSpec((tm, kdim), lambda i: (i, 0)),
                  pl.BlockSpec((kdim, cout), lambda i: (0, 0)),
                  pl.BlockSpec((1, cout), lambda i: (0, 0)),
                  pl.BlockSpec((1, cout), lambda i: (0, 0))],
        out_specs=pl.BlockSpec((tm, cout), lambda i: (i, 0)),
        compiler_params=_compiler_params(("parallel",)),
    )(x, w, scale, bias)


def _expand_dw_kernel(*refs, k, has_expand):
    # Fused: [expansion 1x1 conv + BN + SiLU (MXU, bf16)] -> depthwise KxK conv
    # (stride-1, VPU shift-mul-acc) + BN + SiLU.  One batch element per grid step;
    # the ce-wide expanded activation stays in VMEM.
    if has_expand:
        (x_ref, mask_ref, ew_ref, es_ref, eb_ref,
         dww_ref, dws_ref, dwb_ref, o_ref) = refs
    else:
        x_ref, dww_ref, dws_ref, dwb_ref, o_ref = refs
    _, hp, wp, cin = x_ref.shape
    _, h, w, ce = o_ref.shape

    if has_expand:
        # The input frame is zero-padded; expansion of the zero border gives
        # silu(bias) != 0, so re-zero it with a precomputed (1,hp,wp,1) mask.
        xm = x_ref[...].reshape(hp * wp, cin)
        y = jnp.dot(xm, ew_ref[...], preferred_element_type=jnp.float32)
        y = y * es_ref[...] + eb_ref[...]
        y = y * jax.nn.sigmoid(y)
        xe = y.reshape(1, hp, wp, ce) * mask_ref[...]
    else:
        xe = x_ref[...].astype(jnp.float32)

    dw = dww_ref[...]                                  # (k*k, 1, 1, ce)
    acc = jnp.zeros((1, h, w, ce), jnp.float32)
    for i in range(k):
        for j in range(k):
            acc = acc + xe[:, i:i + h, j:j + w, :] * dw[i * k + j]
    y = acc * dws_ref[...] + dwb_ref[...]
    o_ref[...] = (y * jax.nn.sigmoid(y)).astype(o_ref.dtype)


def _expand_dw_call(xpad, mask, ew, es, eb, dww, dws, dwb, k):
    has_expand = ew is not None
    n, hp, wp, cin = xpad.shape
    pad = (k - 1) // 2
    h, w = hp - 2 * pad, wp - 2 * pad
    ce = dww.shape[-1]
    if has_expand:
        args = (xpad, mask, ew, es, eb, dww, dws, dwb)
    else:
        args = (xpad, dww, dws, dwb)
    in_specs = [pl.BlockSpec((1, hp, wp, cin), lambda b: (b, 0, 0, 0))]
    in_specs += [_bcast_spec(a) for a in args[1:]]
    return pl.pallas_call(
        functools.partial(_expand_dw_kernel, k=k, has_expand=has_expand),
        out_shape=jax.ShapeDtypeStruct((n, h, w, ce), jnp.bfloat16),
        grid=(n,),
        in_specs=in_specs,
        out_specs=pl.BlockSpec((1, h, w, ce), lambda b: (b, 0, 0, 0)),
        compiler_params=_compiler_params(("parallel",)),
    )(*args)


expand_dw = jax.jit(_expand_dw_call, static_argnames=("k",))


def _se_proj_kernel(*refs, has_res):
    # Fused Squeeze-Excite (global-avg-pool -> fc1/SiLU -> fc2/Sigmoid -> gate)
    # + projection 1x1 conv + folded-BN (+ residual).  One batch element per step.
    if has_res:
        (x_ref, w1_ref, b1_ref, w2_ref, b2_ref,
         wp_ref, sp_ref, bp_ref, res_ref, o_ref) = refs
    else:
        (x_ref, w1_ref, b1_ref, w2_ref, b2_ref,
         wp_ref, sp_ref, bp_ref, o_ref) = refs
        res_ref = None

    x = x_ref[0].astype(jnp.float32)                    # (hw, ce)
    s = jnp.mean(x, axis=0, keepdims=True)              # global avg pool -> (1, ce)
    s = jnp.dot(s.astype(jnp.bfloat16), w1_ref[...],
                preferred_element_type=jnp.float32) + b1_ref[...]
    s = s * jax.nn.sigmoid(s)                           # SiLU
    s = jnp.dot(s.astype(jnp.bfloat16), w2_ref[...],
                preferred_element_type=jnp.float32) + b2_ref[...]
    s = jax.nn.sigmoid(s)                               # gate (1, ce)
    xg = (x * s).astype(jnp.bfloat16)                   # (hw, ce)
    y = jnp.dot(xg, wp_ref[...], preferred_element_type=jnp.float32)   # project 1x1
    y = y * sp_ref[...] + bp_ref[...]                   # folded BN (no activation)
    if has_res:
        y = y + res_ref[0].astype(jnp.float32)          # residual (StochasticDepth=id)
    o_ref[0] = y.astype(o_ref.dtype)


def _se_project_call(x3, w1, b1, w2, b2, wp, sp, bp, res):
    n, hw, ce = x3.shape
    cout = wp.shape[1]
    has_res = res is not None
    args = (x3, w1, b1, w2, b2, wp, sp, bp) + ((res,) if has_res else ())
    in_specs = [pl.BlockSpec((1, hw, ce), lambda b: (b, 0, 0))]
    in_specs += [_bcast_spec(a) for a in (w1, b1, w2, b2, wp, sp, bp)]
    if has_res:
        in_specs.append(pl.BlockSpec((1, hw, cout), lambda b: (b, 0, 0)))
    return pl.pallas_call(
        functools.partial(_se_proj_kernel, has_res=has_res),
        out_shape=jax.ShapeDtypeStruct((n, hw, cout), jnp.bfloat16),
        grid=(n,),
        in_specs=in_specs,
        out_specs=pl.BlockSpec((1, hw, cout), lambda b: (b, 0, 0)),
        compiler_params=_compiler_params(("parallel",)),
    )(*args)


se_project = jax.jit(_se_project_call)


# ----------------------------------------------------------------------------- params

def _fold_bn(gamma, beta, mean, var, eps=1e-5):
    s = gamma / jnp.sqrt(var + eps)
    return s, beta - mean * s


class _ParamGen:
    def __init__(self, seed=0):
        self._key = jax.random.PRNGKey(seed)
        self._i = 0

    def normal(self, shape, fan_in):
        self._i += 1
        k = jax.random.fold_in(self._key, self._i)
        return jax.random.normal(k, shape, jnp.float32) * (0.5 / math.sqrt(fan_in))


def _bn_params(c):
    # torch BatchNorm2d defaults: weight=1, bias=0, running_mean=0, running_var=1
    s, b = _fold_bn(jnp.ones((c,)), jnp.zeros((c,)), jnp.zeros((c,)), jnp.ones((c,)))
    return s, b


def build_efficientnet_b7_params(seed=0):
    pg = _ParamGen(seed)
    params = {}

    # features[0]: stem Conv2d(3, 64, k=3, s=2, bias=False) + BN + SiLU.
    # im2col contraction K = 27, zero-padded to 32 for a friendlier MXU contraction.
    stem_w = pg.normal((3, 3, 3, STEM_CH), fan_in=27).reshape(27, STEM_CH)  # HWIO
    stem_w = jnp.concatenate([stem_w, jnp.zeros((5, STEM_CH), jnp.float32)], axis=0)
    s, b = _bn_params(STEM_CH)
    params["stem"] = dict(w=stem_w.astype(jnp.bfloat16),
                          scale=s.reshape(1, -1), bias=b.reshape(1, -1))

    stages = []
    for (exp, k, stride, cin, cout, nb) in B7_CONFIG:
        blocks = []
        for bi in range(nb):
            b_cin = cin if bi == 0 else cout
            b_stride = stride if bi == 0 else 1
            ce = b_cin * exp
            csq = max(1, b_cin // 4)
            blk = dict(k=k, stride=b_stride, cin=b_cin, cout=cout, ce=ce,
                       use_res=(b_stride == 1 and b_cin == cout))
            if exp != 1:
                s, b = _bn_params(ce)
                blk["expand"] = dict(
                    w=pg.normal((b_cin, ce), fan_in=b_cin).astype(jnp.bfloat16),
                    scale=s.reshape(1, -1), bias=b.reshape(1, -1))
            s, b = _bn_params(ce)
            blk["dw"] = dict(w=pg.normal((k * k, 1, 1, ce), fan_in=k * k),
                             scale=s.reshape(1, 1, 1, -1), bias=b.reshape(1, 1, 1, -1))
            blk["se"] = dict(
                w1=pg.normal((ce, csq), fan_in=ce).astype(jnp.bfloat16),
                b1=jnp.zeros((1, csq), jnp.float32),
                w2=pg.normal((csq, ce), fan_in=csq).astype(jnp.bfloat16),
                b2=jnp.zeros((1, ce), jnp.float32))
            s, b = _bn_params(cout)
            blk["proj"] = dict(
                w=pg.normal((ce, cout), fan_in=ce).astype(jnp.bfloat16),
                scale=s.reshape(1, -1), bias=b.reshape(1, -1))
            blocks.append(blk)
        stages.append(blocks)
    params["stages"] = stages
    return params


# ----------------------------------------------------------------------------- forward

def _stem_forward(x, p):
    # 3x3 stride-2 conv via im2col (XLA glue) + gridded Pallas matmul + BN + SiLU.
    n, h, w, c = x.shape
    xp = jnp.pad(x, ((0, 0), (1, 1), (1, 1), (0, 0)))
    ho, wo = h // 2, w // 2
    patches = [xp[:, i:i + 2 * ho:2, j:j + 2 * wo:2, :]
               for i in range(3) for j in range(3)]
    extra = p["w"].shape[0] - 9 * c
    if extra:
        patches.append(jnp.zeros((n, ho, wo, extra), x.dtype))
    xcol = jnp.concatenate(patches, axis=-1).reshape(n * ho * wo, p["w"].shape[0])
    y = pointwise(xcol, p["w"], p["scale"], p["bias"], act="silu")
    return y.reshape(n, ho, wo, -1)


def _mbconv_forward(x, blk):
    n, h, w, cin = x.shape
    k, stride, ce, cout = blk["k"], blk["stride"], blk["ce"], blk["cout"]
    pad = (k - 1) // 2
    d = blk["dw"]

    # 1)+2) expansion 1x1 + BN + SiLU fused with depthwise KxK + BN + SiLU.
    #       Only the narrow (cin-wide) input is zero-padded in XLA; the ce-wide
    #       expanded activation stays in VMEM inside the fused kernel.
    xpad = jnp.pad(x, ((0, 0), (pad, pad), (pad, pad), (0, 0)))
    if "expand" in blk:
        e = blk["expand"]
        mask = jnp.pad(jnp.ones((1, h, w, 1), jnp.float32),
                       ((0, 0), (pad, pad), (pad, pad), (0, 0)))
        hd = expand_dw(xpad, mask, e["w"], e["scale"], e["bias"],
                       d["w"], d["scale"], d["bias"], k=k)
    else:
        hd = expand_dw(xpad, None, None, None, None,
                       d["w"], d["scale"], d["bias"], k=k)
    if stride > 1:
        # identical math for odd k with (k-1)//2 padding; see TODO at top of file.
        hd = hd[:, ::stride, ::stride, :]
    ho, wo = hd.shape[1], hd.shape[2]

    # 3) fused SE + projection conv + BN (+ residual); StochasticDepth == identity.
    se, pr = blk["se"], blk["proj"]
    x3 = hd.reshape(n, ho * wo, ce)
    res = x.reshape(n, ho * wo, cout) if blk["use_res"] else None
    y = se_project(x3, se["w1"], se["b1"], se["w2"], se["b2"],
                   pr["w"], pr["scale"], pr["bias"], res)
    return y.reshape(n, ho, wo, cout)


def efficientnet_features(x_nchw, params, out_index=OUT_INDEX):
    """Replicates EfficientNet.forward: run model.features[i], collect at out_index."""
    x = jnp.transpose(x_nchw, (0, 2, 3, 1)).astype(jnp.bfloat16)   # NCHW -> NHWC, bf16
    max_idx = max(out_index)
    feats = {}

    # features[0] = stem
    x = _stem_forward(x, params["stem"])
    if 0 in out_index:
        feats[0] = x

    # features[1..7] = MBConv stages
    if max_idx > 0:
        for si, blocks in enumerate(params["stages"]):
            layer_idx = si + 1
            for blk in blocks:
                x = _mbconv_forward(x, blk)
            if layer_idx in out_index:
                feats[layer_idx] = x
            if layer_idx == max_idx:
                break

    # PyTorch appends in layer order; return NCHW f32 like the torch module.
    return [jnp.transpose(feats[i], (0, 3, 1, 2)).astype(jnp.float32)
            for i in sorted(feats)]


# ----------------------------------------------------------------------------- main

if __name__ == "__main__":
    key = jax.random.PRNGKey(0)
    x = jax.random.normal(key, (2, 3, 64, 64), jnp.float32)   # NCHW, small spatial

    params = build_efficientnet_b7_params(seed=0)
    outs = efficientnet_features(x, params, OUT_INDEX)
    outs = jax.block_until_ready(outs)

    expected = {2: (2, 48, 16, 16), 3: (2, 80, 8, 8), 5: (2, 224, 4, 4), 7: (2, 640, 2, 2)}
    for o, idx in zip(outs, sorted(OUT_INDEX)):
        assert o.shape == expected[idx], (idx, o.shape, expected[idx])
        assert bool(jnp.all(jnp.isfinite(o)))

    print("KERNEL_OK")
</pallas_src>

<mosaic_0001>
module attributes {stable_mosaic.version = 11 : i64} {
  func.func @_pw_kernel(%arg0: i32, %arg1: memref<512x32xbf16, #tpu.memory_space<vmem>>, %arg2: memref<32x64xbf16, #tpu.memory_space<vmem>>, %arg3: memref<1x64xf32, #tpu.memory_space<vmem>>, %arg4: memref<1x64xf32, #tpu.memory_space<vmem>>, %arg5: memref<512x64xbf16, #tpu.memory_space<vmem>>) attributes {dimension_semantics = [#tpu.dimension_semantics<parallel>], iteration_bounds = array<i64: 4>, scalar_prefetch = 0 : i64, scratch_operands = 0 : i64, tpu.core_type = #tpu.core_type<tc>, window_params = [{transform_indices = @transform_0, window_bounds = array<i64: 512, 32>}, {pipeline_mode = #tpu.pipeline_mode<synchronous>, transform_indices = @transform_1, window_bounds = array<i64: 32, 64>}, {pipeline_mode = #tpu.pipeline_mode<synchronous>, transform_indices = @transform_2, window_bounds = array<i64: 1, 64>}, {pipeline_mode = #tpu.pipeline_mode<synchronous>, transform_indices = @transform_3, window_bounds = array<i64: 1, 64>}, {transform_indices = @transform_4, window_bounds = array<i64: 512, 64>}]} {
    %c0 = arith.constant 0 : index
    %c0_0 = arith.constant 0 : index
    %0 = vector.load %arg1[%c0, %c0_0] : memref<512x32xbf16, #tpu.memory_space<vmem>>, vector<512x32xbf16>
    %c0_1 = arith.constant 0 : index
    %c0_2 = arith.constant 0 : index
    %1 = vector.load %arg2[%c0_1, %c0_2] : memref<32x64xbf16, #tpu.memory_space<vmem>>, vector<32x64xbf16>
    %cst = arith.constant dense<0.000000e+00> : vector<512x64xf32>
    %2 = tpu.matmul %0, %1, %cst {dimension_numbers = #tpu.dot_dimension_numbers<[1], [0], [0], [1], [0, 0, 1, 1], [], []>} : vector<512x32xbf16>, vector<32x64xbf16>, vector<512x64xf32> -> vector<512x64xf32>
    %c0_3 = arith.constant 0 : index
    %c0_4 = arith.constant 0 : index
    %3 = vector.load %arg3[%c0_3, %c0_4] : memref<1x64xf32, #tpu.memory_space<vmem>>, vector<1x64xf32>
    %4 = vector.broadcast %3 : vector<1x64xf32> to vector<512x64xf32>
    %5 = arith.mulf %2, %4 : vector<512x64xf32>
    %c0_5 = arith.constant 0 : index
    %c0_6 = arith.constant 0 : index
    %6 = vector.load %arg4[%c0_5, %c0_6] : memref<1x64xf32, #tpu.memory_space<vmem>>, vector<1x64xf32>
    %7 = vector.broadcast %6 : vector<1x64xf32> to vector<512x64xf32>
    %8 = arith.addf %5, %7 : vector<512x64xf32>
    %9 = arith.negf %8 : vector<512x64xf32>
    %10 = math.exp %9 : vector<512x64xf32>
    %cst_7 = arith.constant 1.000000e+00 : f32
    %11 = vector.broadcast %cst_7 : f32 to vector<512x64xf32>
    %12 = arith.addf %11, %10 : vector<512x64xf32>
    %13 = arith.divf %11, %12 : vector<512x64xf32>
    %14 = arith.mulf %8, %13 : vector<512x64xf32>
    %15 = arith.truncf %14 : vector<512x64xf32> to vector<512x64xbf16>
    %c0_8 = arith.constant 0 : index
    %c0_9 = arith.constant 0 : index
    %16 = vector.load %arg5[%c0_8, %c0_9] : memref<512x64xbf16, #tpu.memory_space<vmem>>, vector<512x64xbf16>
    tpu.vector_store %arg5[%c0_8, %c0_9], %15 {strides = array<i32>} : memref<512x64xbf16, #tpu.memory_space<vmem>>, vector<512x64xbf16>,
    return
  }
  func.func @transform_0(%arg0: i32) -> (i32, i32) {
    %c0_i32 = arith.constant 0 : i32
    %c0_i32_0 = arith.constant 0 : i32
    return %arg0, %c0_i32 : i32, i32
  }
  func.func @transform_1(%arg0: i32) -> (i32, i32) {
    %c0_i32 = arith.constant 0 : i32
    %c0_i32_0 = arith.constant 0 : i32
    %c0_i32_1 = arith.constant 0 : i32
    return %c0_i32, %c0_i32_0 : i32, i32
  }
  func.func @transform_2(%arg0: i32) -> (i32, i32) {
    %c0_i32 = arith.constant 0 : i32
    %c0_i32_0 = arith.constant 0 : i32
    %c0_i32_1 = arith.constant 0 : i32
    return %c0_i32, %c0_i32_0 : i32, i32
  }
  func.func @transform_3(%arg0: i32) -> (i32, i32) {
    %c0_i32 = arith.constant 0 : i32
    %c0_i32_0 = arith.constant 0 : i32
    %c0_i32_1 = arith.constant 0 : i32
    return %c0_i32, %c0_i32_0 : i32, i32
  }
  func.func @transform_4(%arg0: i32) -> (i32, i32) {
    %c0_i32 = arith.constant 0 : i32
    %c0_i32_0 = arith.constant 0 : i32
    return %arg0, %c0_i32 : i32, i32
  }
}

</mosaic_0001>

<llo_original>
// kernel: pointwise.1
$region0: #{pointwise.1}
  #allocation0 [shape = 'u32[]', space=smem, size = 0x4, offset = 0x4, fixed_abs, tag = 'smem constant byte address 0x4 - core index']
  #allocation1 [shape = 'u32[144,128]{1,0:T(1,128)}', space=vmem, size = 0x12000, scoped, tag = 'internal scratch']
  %s0 = inlined_call_operand.vmem [shape: bf16[2048,32], index: 0, kind: input, shape index: {}]
  %s1 = inlined_call_operand.vmem [shape: bf16[32,64], index: 1, kind: input, shape index: {}]
  %s2 = inlined_call_operand.vmem [shape: f32[1,64], index: 2, kind: input, shape index: {}]
  %s3 = inlined_call_operand.vmem [shape: f32[1,64], index: 3, kind: input, shape index: {}]
  %s4 = inlined_call_operand.vmem [shape: bf16[2048,64], index: 4, kind: output, shape index: {}]
  %s5 = sld [smem:[#allocation0]]
  $region49: #{pointwise.1} parent=0
    _
  %s7 = ssub.s32 1, %s5
  %s8 = scalar_select 0, %s7, %s5
  loop: start=0, step=1, limit=6
  $region2: #{pointwise.1} parent=0 // loop_pre_header
    _
  $region3: #{pointwise.1} parent=0 // loop_header
    %s10 = sphi 0, %s14
    %p11 = scmp.ge.s32.totalorder %s10, 6
    %s20 = sphi 0, %s22
    %s23 = sphi 0, %s20
    %s24 = sphi 0, %s23
    %s40 = sphi 0, %s24
    %s44 = sphi 0, %s44
    %s46 = sphi 0, %s44
    %s47 = sphi 0, %s46
    %s61 = sphi 0, %s47
    %s65 = sphi 0, %s65
    %s67 = sphi 0, %s65
    %s68 = sphi 0, %s67
    %s82 = sphi 0, %s68
    %s86 = sphi 0, %s86
    %s88 = sphi 0, %s86
    %s89 = sphi 0, %s88
    %s103 = sphi 0, %s89
    %s109 = sphi 0, %s111
    %s112 = sphi 0, %s109
    %s113 = sphi 0, %s112
    %s129 = sphi 0, %s113
  $region4: #{pointwise.1} parent=0 // loop_header_branch
    %13 = sbr.rel (%p11) target = $region8
  $region5: #{pointwise.1} parent=0 // loop_body
    %s15 = ssub.s32 %s10, 1
    %s16 = ssub.s32 %s10, 2
    %s17 = sadd.s32 %s10, 1
    %s18 = ssub.s32 %s10, %s17
    %p19 = scmp.eq.s32.totalorder %s18, 0
    %s21 = sadd.s32 %s20, 1
    %s22 = scalar_select %p19, %s20, %s21
    %p25 = pneg %p19
    %p26 = scmp.eq.s32.totalorder %s10, 3
    %p27 = por %p25, %p26
    %p28 = scmp.ne.s32.totalorder %s20, %s23
    %p29 = scmp.eq.s32.totalorder %s10, 0
    %p30 = por %p28, %p29
    %p31 = scmp.ne.s32.totalorder %s20, %s23
    %p32 = scmp.eq.s32.totalorder %s15, 3
    %p33 = por %p31, %p32
    %p34 = scmp.ne.s32.totalorder %s23, %s24
    %p35 = scmp.eq.s32.totalorder %s15, 0
    %p36 = por %p34, %p35
    %p37 = scmp.ne.s32.totalorder %s23, %s24
    %p38 = scmp.eq.s32.totalorder %s16, 3
    %p39 = por %p37, %p38
    %p41 = scmp.ne.s32.totalorder %s24, %s40
    %p42 = scmp.eq.s32.totalorder %s16, 0
    %p43 = por %p41, %p42
    %s45 = sadd.s32 %s44, 1
    %p48 = scmp.eq.s32.totalorder %s10, 3
    %p49 = scmp.ne.s32.totalorder %s44, %s46
    %p50 = scmp.eq.s32.totalorder %s10, 0
    %p51 = por %p49, %p50
    %p52 = scmp.ne.s32.totalorder %s44, %s46
    %p53 = scmp.eq.s32.totalorder %s15, 3
    %p54 = por %p52, %p53
    %p55 = scmp.ne.s32.totalorder %s46, %s47
    %p56 = scmp.eq.s32.totalorder %s15, 0
    %p57 = por %p55, %p56
    %p58 = scmp.ne.s32.totalorder %s46, %s47
    %p59 = scmp.eq.s32.totalorder %s16, 3
    %p60 = por %p58, %p59
    %p62 = scmp.ne.s32.totalorder %s47, %s61
    %p63 = scmp.eq.s32.totalorder %s16, 0
    %p64 = por %p62, %p63
    %s66 = sadd.s32 %s65, 1
    %p69 = scmp.eq.s32.totalorder %s10, 3
    %p70 = scmp.ne.s32.totalorder %s65, %s67
    %p71 = scmp.eq.s32.totalorder %s10, 0
    %p72 = por %p70, %p71
    %p73 = scmp.ne.s32.totalorder %s65, %s67
    %p74 = scmp.eq.s32.totalorder %s15, 3
    %p75 = por %p73, %p74
    %p76 = scmp.ne.s32.totalorder %s67, %s68
    %p77 = scmp.eq.s32.totalorder %s15, 0
    %p78 = por %p76, %p77
    %p79 = scmp.ne.s32.totalorder %s67, %s68
    %p80 = scmp.eq.s32.totalorder %s16, 3
    %p81 = por %p79, %p80
    %p83 = scmp.ne.s32.totalorder %s68, %s82
    %p84 = scmp.eq.s32.totalorder %s16, 0
    %p85 = por %p83, %p84
    %s87 = sadd.s32 %s86, 1
    %p90 = scmp.eq.s32.totalorder %s10, 3
    %p91 = scmp.ne.s32.totalorder %s86, %s88
    %p92 = scmp.eq.s32.totalorder %s10, 0
    %p93 = por %p91, %p92
    %p94 = scmp.ne.s32.totalorder %s86, %s88
    %p95 = scmp.eq.s32.totalorder %s15, 3
    %p96 = por %p94, %p95
    %p97 = scmp.ne.s32.totalorder %s88, %s89
    %p98 = scmp.eq.s32.totalorder %s15, 0
    %p99 = por %p97, %p98
    %p100 = scmp.ne.s32.totalorder %s88, %s89
    %p101 = scmp.eq.s32.totalorder %s16, 3
    %p102 = por %p100, %p101
    %p104 = scmp.ne.s32.totalorder %s89, %s103
    %p105 = scmp.eq.s32.totalorder %s16, 0
    %p106 = por %p104, %p105
    %s107 = ssub.s32 %s10, %s17
    %p108 = scmp.eq.s32.totalorder %s107, 0
    %s110 = sadd.s32 %s109, 1
    %s111 = scalar_select %p108, %s109, %s110
    %p114 = pneg %p108
    %p115 = scmp.eq.s32.totalorder %s10, 3
    %p116 = por %p114, %p115
    %p117 = scmp.ne.s32.totalorder %s109, %s112
    %p118 = scmp.eq.s32.totalorder %s10, 0
    %p119 = por %p117, %p118
    %p120 = scmp.ne.s32.totalorder %s109, %s112
    %p121 = scmp.eq.s32.totalorder %s15, 3
    %p122 = por %p120, %p121
    %p123 = scmp.ne.s32.totalorder %s112, %s113
    %p124 = scmp.eq.s32.totalorder %s15, 0
    %p125 = por %p123, %p124
    %p126 = scmp.ne.s32.totalorder %s112, %s113
    %p127 = scmp.eq.s32.totalorder %s16, 3
    %p128 = por %p126, %p127
    %p130 = scmp.ne.s32.totalorder %s113, %s129
    %p131 = scmp.eq.s32.totalorder %s16, 0
    %p132 = por %p130, %p131
    %p133 = scmp.le.s32.totalorder 1, %s10
    %p134 = scmp.lt.s32.totalorder %s10, 5
    %p135 = pnand %p133, %p134
    %p136 = pneg %p135
    // Predicated region
    $region9: #{pointwise.1} parent=5 // pred_check
      _
    $region10: #{pointwise.1} parent=5 // pred_check_branch
      %138 = sbr.rel (%p135) target = $region12
    $region11: #{pointwise.1} parent=5 // pred_region
      %s139 = ssub.s32 %s10, 1
      // Predicated region
      $region13: #{pointwise.1} parent=11 // pred_check
        %p140 = pneg %p57
      $region14: #{pointwise.1} parent=11 // pred_check_branch
        %142 = sbr.rel (%p140) target = $region16
      $region15: #{pointwise.1} parent=11 // pred_region
        _
      $region16: #{pointwise.1} parent=11 // pred_fallthru
        _
      // Predicated region
      $region17: #{pointwise.1} parent=11 // pred_check
        %p143 = pneg %p78
      $region18: #{pointwise.1} parent=11 // pred_check_branch
        %145 = sbr.rel (%p143) target = $region20
      $region19: #{pointwise.1} parent=11 // pred_region
        _
      $region20: #{pointwise.1} parent=11 // pred_fallthru
        _
      // Predicated region
      $region21: #{pointwise.1} parent=11 // pred_check
        %p146 = pneg %p99
      $region22: #{pointwise.1} parent=11 // pred_check_branch
        %148 = sbr.rel (%p146) target = $region24
      $region23: #{pointwise.1} parent=11 // pred_region
        _
      $region24: #{pointwise.1} parent=11 // pred_fallthru
        _
    $region12: #{pointwise.1} parent=5 // pred_fallthru
      _
    %p149 = scmp.lt.s32.totalorder %s10, 4
    // Predicated region
    $region25: #{pointwise.1} parent=5 // pred_check
      %p150 = pneg %p149
    $region26: #{pointwise.1} parent=5 // pred_check_branch
      %152 = sbr.rel (%p150) target = $region28
    $region27: #{pointwise.1} parent=5 // pred_region
      // Predicated region
      $region29: #{pointwise.1} parent=27 // pred_check
        %p153 = pneg %p30
      $region30: #{pointwise.1} parent=27 // pred_check_branch
        %155 = sbr.rel (%p153) target = $region32
      $region31: #{pointwise.1} parent=27 // pred_region
        %s156 = smul.u32 64, %s10
        %p157 = scmp.lt.s32.totalorder %s156, 255
        %s158 = scalar_select %p157, %s156, 255
        %s159 = smul.addr %s158, 4
        %s160 = scalar_lea.vmem %s0, %s159
        %s161 = smul.u32 64, %s10
      $region32: #{pointwise.1} parent=27 // pred_fallthru
        _
    $region28: #{pointwise.1} parent=5 // pred_fallthru
      _
    %p162 = scmp.le.s32.totalorder 1, %s10
    %p163 = scmp.lt.s32.totalorder %s10, 5
    %p164 = pnand %p162, %p163
    %p165 = pneg %p164
    // Predicated region
    $region33: #{pointwise.1} parent=5 // pred_check
      _
    $region34: #{pointwise.1} parent=5 // pred_check_branch
      %167 = sbr.rel (%p164) target = $region36
    $region35: #{pointwise.1} parent=5 // pred_region
      %s168 = ssub.s32 %s10, 1
      %s169 = smul.u32 64, %s15
      %p170 = scmp.lt.s32.totalorder %s169, 255
      %s171 = scalar_select %p170, %s169, 255
      %s172 = smul.addr %s171, 4
      %s173 = scalar_lea.vmem %s0, %s172
      %p174 = pneg %p36
      %p175 = pneg %p33
      %p176 = pneg %p57
      %p177 = pneg %p54
      %p178 = pneg %p78
      %p179 = pneg %p75
      %p180 = pneg %p99
      %p181 = pneg %p96
      %p182 = pneg %p125
      %p183 = pneg %p122
      %s184 = smul.u32 64, %s15
      %p185 = scmp.lt.s32.totalorder %s184, 255
      %s186 = scalar_select %p185, %s184, 255
      %s187 = smul.addr %s186, 4
      %s188 = scalar_lea.vmem %s4, %s187
      %s189 = smul.u32 64, %s15
      %p190 = scmp.lt.s32.totalorder %s189, 255
      %s191 = scalar_select %p190, %s189, 255
      %s192 = smul.addr %s191, 4
      %s193 = scalar_lea.vmem %s0, %s192
      %s194 = smul.u32 64, %s15
      %s195 = smul.u32 64, %s15
      %p196 = scmp.lt.s32.totalorder %s195, 255
      %s197 = scalar_select %p196, %s195, 255
      %s198 = smul.addr %s197, 4
      %s199 = scalar_lea.vmem %s4, %s198
      %s200 = smul.u32 64, %s15
      %v202 = vld [vmem:[%s193] sm:$0xf]
      %v203 = vld [vmem:[%s193 + $0x4] sm:$0xf]
      %v204 = vld [vmem:[%s193 + $0x8] sm:$0xf]
      %v205 = vld [vmem:[%s193 + $0xc] sm:$0xf]
      %v206 = vld [vmem:[%s193 + $0x10] sm:$0xf]
      %v207 = vld [vmem:[%s193 + $0x14] sm:$0xf]
      %v208 = vld [vmem:[%s193 + $0x18] sm:$0xf]
      %v209 = vld [vmem:[%s193 + $0x1c] sm:$0xf]
      %v210 = vld [vmem:[%s193 + $0x20] sm:$0xf]
      %v211 = vld [vmem:[%s193 + $0x24] sm:$0xf]
      %v212 = vld [vmem:[%s193 + $0x28] sm:$0xf]
      %v213 = vld [vmem:[%s193 + $0x2c] sm:$0xf]
      %v214 = vld [vmem:[%s193 + $0x30] sm:$0xf]
      %v215 = vld [vmem:[%s193 + $0x34] sm:$0xf]
      %v216 = vld [vmem:[%s193 + $0x38] sm:$0xf]
      %v217 = vld [vmem:[%s193 + $0x3c] sm:$0xf]
      %v218 = vld [vmem:[%s193 + $0x40] sm:$0xf]
      %v219 = vld [vmem:[%s193 + $0x44] sm:$0xf]
      %v220 = vld [vmem:[%s193 + $0x48] sm:$0xf]
      %v221 = vld [vmem:[%s193 + $0x4c] sm:$0xf]
      %v222 = vld [vmem:[%s193 + $0x50] sm:$0xf]
      %v223 = vld [vmem:[%s193 + $0x54] sm:$0xf]
      %v224 = vld [vmem:[%s193 + $0x58] sm:$0xf]
      %v225 = vld [vmem:[%s193 + $0x5c] sm:$0xf]
      %v226 = vld [vmem:[%s193 + $0x60] sm:$0xf]
      %v227 = vld [vmem:[%s193 + $0x64] sm:$0xf]
      %v228 = vld [vmem:[%s193 + $0x68] sm:$0xf]
      %v229 = vld [vmem:[%s193 + $0x6c] sm:$0xf]
      %v230 = vld [vmem:[%s193 + $0x70] sm:$0xf]
      %v231 = vld [vmem:[%s193 + $0x74] sm:$0xf]
      %v232 = vld [vmem:[%s193 + $0x78] sm:$0xf]
      %v233 = vld [vmem:[%s193 + $0x7c] sm:$0xf]
      %v234 = vld [vmem:[%s193 + $0x80] sm:$0xf]
      %v235 = vld [vmem:[%s193 + $0x84] sm:$0xf]
      %v236 = vld [vmem:[%s193 + $0x88] sm:$0xf]
      %v237 = vld [vmem:[%s193 + $0x8c] sm:$0xf]
      %v238 = vld [vmem:[%s193 + $0x90] sm:$0xf]
      %v239 = vld [vmem:[%s193 + $0x94] sm:$0xf]
      %v240 = vld [vmem:[%s193 + $0x98] sm:$0xf]
      %v241 = vld [vmem:[%s193 + $0x9c] sm:$0xf]
      %v242 = vld [vmem:[%s193 + $0xa0] sm:$0xf]
      %v243 = vld [vmem:[%s193 + $0xa4] sm:$0xf]
      %v244 = vld [vmem:[%s193 + $0xa8] sm:$0xf]
      %v245 = vld [vmem:[%s193 + $0xac] sm:$0xf]
      %v246 = vld [vmem:[%s193 + $0xb0] sm:$0xf]
      %v247 = vld [vmem:[%s193 + $0xb4] sm:$0xf]
      %v248 = vld [vmem:[%s193 + $0xb8] sm:$0xf]
      %v249 = vld [vmem:[%s193 + $0xbc] sm:$0xf]
      %v250 = vld [vmem:[%s193 + $0xc0] sm:$0xf]
      %v251 = vld [vmem:[%s193 + $0xc4] sm:$0xf]
      %v252 = vld [vmem:[%s193 + $0xc8] sm:$0xf]
      %v253 = vld [vmem:[%s193 + $0xcc] sm:$0xf]
      %v254 = vld [vmem:[%s193 + $0xd0] sm:$0xf]
      %v255 = vld [vmem:[%s193 + $0xd4] sm:$0xf]
      %v256 = vld [vmem:[%s193 + $0xd8] sm:$0xf]
      %v257 = vld [vmem:[%s193 + $0xdc] sm:$0xf]
      %v258 = vld [vmem:[%s193 + $0xe0] sm:$0xf]
      %v259 = vld [vmem:[%s193 + $0xe4] sm:$0xf]
      %v260 = vld [vmem:[%s193 + $0xe8] sm:$0xf]
      %v261 = vld [vmem:[%s193 + $0xec] sm:$0xf]
      %v262 = vld [vmem:[%s193 + $0xf0] sm:$0xf]
      %v263 = vld [vmem:[%s193 + $0xf4] sm:$0xf]
      %v264 = vld [vmem:[%s193 + $0xf8] sm:$0xf]
      %v265 = vld [vmem:[%s193 + $0xfc] sm:$0xf]
      %v266 = vld [vmem:[%s1] sm:$0xf]
      %v267 = vld [vmem:[%s1 + $0x4] sm:$0xf]
      %v268 = vld [vmem:[%s1 + $0x8] sm:$0xf]
      %v269 = vld [vmem:[%s1 + $0xc] sm:$0xf]
      %v334 = vunpack.c.l.b16 %v202
      %v335 = vunpack.c.l.b16 %v203
      %v336 = vunpack.c.l.b16 %v204
      %v337 = vunpack.c.l.b16 %v205
      %v338 = vunpack.c.l.b16 %v206
      %v339 = vunpack.c.l.b16 %v207
      %v340 = vunpack.c.l.b16 %v208
      %v341 = vunpack.c.l.b16 %v209
      %v342 = vunpack.c.l.b16 %v210
      %v343 = vunpack.c.l.b16 %v211
      %v344 = vunpack.c.l.b16 %v212
      %v345 = vunpack.c.l.b16 %v213
      %v346 = vunpack.c.l.b16 %v214
      %v347 = vunpack.c.l.b16 %v215
      %v348 = vunpack.c.l.b16 %v216
      %v349 = vunpack.c.l.b16 %v217
      %v350 = vunpack.c.l.b16 %v218
      %v351 = vunpack.c.l.b16 %v219
      %v352 = vunpack.c.l.b16 %v220
      %v353 = vunpack.c.l.b16 %v221
      %v354 = vunpack.c.l.b16 %v222
      %v355 = vunpack.c.l.b16 %v223
      %v356 = vunpack.c.l.b16 %v224
      %v357 = vunpack.c.l.b16 %v225
      %v358 = vunpack.c.l.b16 %v226
      %v359 = vunpack.c.l.b16 %v227
      %v360 = vunpack.c.l.b16 %v228
      %v361 = vunpack.c.l.b16 %v229
      %v362 = vunpack.c.l.b16 %v230
      %v363 = vunpack.c.l.b16 %v231
      %v364 = vunpack.c.l.b16 %v232
      %v365 = vunpack.c.l.b16 %v233
      %v366 = vunpack.c.l.b16 %v234
      %v367 = vunpack.c.l.b16 %v235
      %v368 = vunpack.c.l.b16 %v236
      %v369 = vunpack.c.l.b16 %v237
      %v370 = vunpack.c.l.b16 %v238
      %v371 = vunpack.c.l.b16 %v239
      %v372 = vunpack.c.l.b16 %v240
      %v373 = vunpack.c.l.b16 %v241
      %v374 = vunpack.c.l.b16 %v242
      %v375 = vunpack.c.l.b16 %v243
      %v376 = vunpack.c.l.b16 %v244
      %v377 = vunpack.c.l.b16 %v245
      %v378 = vunpack.c.l.b16 %v246
      %v379 = vunpack.c.l.b16 %v247
      %v380 = vunpack.c.l.b16 %v248
      %v381 = vunpack.c.l.b16 %v249
      %v382 = vunpack.c.l.b16 %v250
      %v383 = vunpack.c.l.b16 %v251
      %v384 = vunpack.c.l.b16 %v252
      %v385 = vunpack.c.l.b16 %v253
      %v386 = vunpack.c.l.b16 %v254
      %v387 = vunpack.c.l.b16 %v255
      %v388 = vunpack.c.l.b16 %v256
      %v389 = vunpack.c.l.b16 %v257
      %v390 = vunpack.c.l.b16 %v258
      %v391 = vunpack.c.l.b16 %v259
      %v392 = vunpack.c.l.b16 %v260
      %v393 = vunpack.c.l.b16 %v261
      %v394 = vunpack.c.l.b16 %v262
      %v395 = vunpack.c.l.b16 %v263
      %v396 = vunpack.c.l.b16 %v264
      %v397 = vunpack.c.l.b16 %v265
      %v398 = vpack.c.b16 %v335, %v334
      %v399 = vpack.c.b16 %v337, %v336
      %v400 = vpack.c.b16 %v339, %v338
      %v401 = vpack.c.b16 %v341, %v340
      %v402 = vpack.c.b16 %v343, %v342
      %v403 = vpack.c.b16 %v345, %v344
      %v404 = vpack.c.b16 %v347, %v346
      %v405 = vpack.c.b16 %v349, %v348
      %v406 = vpack.c.b16 %v351, %v350
      %v407 = vpack.c.b16 %v353, %v352
      %v408 = vpack.c.b16 %v355, %v354
      %v409 = vpack.c.b16 %v357, %v356
      %v410 = vpack.c.b16 %v359, %v358
      %v411 = vpack.c.b16 %v361, %v360
      %v412 = vpack.c.b16 %v363, %v362
      %v413 = vpack.c.b16 %v365, %v364
      %v414 = vpack.c.b16 %v367, %v366
      %v415 = vpack.c.b16 %v369, %v368
      %v416 = vpack.c.b16 %v371, %v370
      %v417 = vpack.c.b16 %v373, %v372
      %v418 = vpack.c.b16 %v375, %v374
      %v419 = vpack.c.b16 %v377, %v376
      %v420 = vpack.c.b16 %v379, %v378
      %v421 = vpack.c.b16 %v381, %v380
      %v422 = vpack.c.b16 %v383, %v382
      %v423 = vpack.c.b16 %v385, %v384
      %v424 = vpack.c.b16 %v387, %v386
      %v425 = vpack.c.b16 %v389, %v388
      %v426 = vpack.c.b16 %v391, %v390
      %v427 = vpack.c.b16 %v393, %v392
      %v428 = vpack.c.b16 %v395, %v394
      %v429 = vpack.c.b16 %v397, %v396
      %v434 = vunpack.c.l.b16 %v266
      %v435 = vunpack.c.l.b16 %v267
      %v436 = vunpack.c.l.b16 %v268
      %v437 = vunpack.c.l.b16 %v269
      %v438 = vpack.c.b16 %v435, %v434
      %v439 = vpack.c.b16 %v437, %v436
      %vm442 = vcmask 261120
      %v444 = vsel %vm442, %v398, 0
      %v447 = vsel %vm442, %v399, 0
      %v450 = vsel %vm442, %v400, 0
      %v453 = vsel %vm442, %v401, 0
      %v456 = vsel %vm442, %v402, 0
      %v459 = vsel %vm442, %v403, 0
      %v462 = vsel %vm442, %v404, 0
      %v465 = vsel %vm442, %v405, 0
      %v468 = vsel %vm442, %v406, 0
      %v471 = vsel %vm442, %v407, 0
      %v474 = vsel %vm442, %v408, 0
      %v477 = vsel %vm442, %v409, 0
      %v480 = vsel %vm442, %v410, 0
      %v483 = vsel %vm442, %v411, 0
      %v486 = vsel %vm442, %v412, 0
      %v489 = vsel %vm442, %v413, 0
      %v492 = vsel %vm442, %v414, 0
      %v495 = vsel %vm442, %v415, 0
      %v498 = vsel %vm442, %v416, 0
      %v501 = vsel %vm442, %v417, 0
      %v504 = vsel %vm442, %v418, 0
      %v507 = vsel %vm442, %v419, 0
      %v510 = vsel %vm442, %v420, 0
      %v513 = vsel %vm442, %v421, 0
      %v516 = vsel %vm442, %v422, 0
      %v519 = vsel %vm442, %v423, 0
      %v522 = vsel %vm442, %v424, 0
      %v525 = vsel %vm442, %v425, 0
      %v528 = vsel %vm442, %v426, 0
      %v531 = vsel %vm442, %v427, 0
      %v534 = vsel %vm442, %v428, 0
      %v537 = vsel %vm442, %v429, 0
      %539 = vmatprep.subr.bf16.mxu0 0
      %540 = vmatpush1.bf16.msra.mxu0 %v438
      %541 = vmatprep.subr.bf16.mxu0 0
      %542 = vmatpush1.bf16.msra.mxu0 %v439
      %543 = vmatprep.subr.bf16.mxu0 0
      %544 = vmatpush1.bf16.msra.mxu0 0
      %545 = vmatprep.subr.bf16.mxu0 0
      %546 = vmatpush1.bf16.msra.mxu0 0
      %547 = vmatprep.subr.bf16.mxu0 0
      %548 = vmatpush1.bf16.msra.mxu0 0
      %549 = vmatprep.subr.bf16.mxu0 0
      %550 = vmatpush1.bf16.msra.mxu0 0
      %551 = vmatprep.subr.bf16.mxu0 0
      %552 = vmatpush1.bf16.msra.mxu0 0
      %553 = vmatprep.subr.bf16.mxu0 0
      %554 = vmatpush1.bf16.msra.mxu0 0
      %555 = vmatprep.subr.bf16.mxu0 0
      %556 = vmatpush1.bf16.msra.mxu0 0
      %557 = vmatprep.subr.bf16.mxu0 0
      %558 = vmatpush1.bf16.msra.mxu0 0
      %559 = vmatprep.subr.bf16.mxu0 0
      %560 = vmatpush1.bf16.msra.mxu0 0
      %561 = vmatprep.subr.bf16.mxu0 0
      %562 = vmatpush1.bf16.msra.mxu0 0
      %563 = vmatprep.subr.bf16.mxu0 0
      %564 = vmatpush1.bf16.msra.mxu0 0
      %565 = vmatprep.subr.bf16.mxu0 0
      %566 = vmatpush1.bf16.msra.mxu0 0
      %567 = vmatprep.subr.bf16.mxu0 0
      %568 = vmatpush1.bf16.msra.mxu0 0
      %569 = vmatprep.subr.bf16.mxu0 0
      %570 = vmatpush1.bf16.msra.mxu0 0
      %571 = vmatprep.mubr.bf16.mxu0 0
      %572 = vmatmul.mubr.bf16.gmra.mrb[0].mxu0 %v444
      %v573 = vpop.f32.mrb[0].mxu0
      %v574 = vadd.f32 0.0, %v573
      %v575 = vpop.f32.mrb[0].mxu0
      %v576 = vpop.f32.mrb[0].mxu0
      %v577 = vadd.f32 0.0, %v576
      %v578 = vpop.f32.mrb[0].mxu0
      %579 = vmatprep.mubr.bf16.mxu0 0
      %580 = vmatmul.mubr.bf16.gmra.mrb[0].mxu0 %v447
      %v581 = vpop.f32.mrb[0].mxu0
      %v582 = vadd.f32 0.0, %v581
      %v583 = vpop.f32.mrb[0].mxu0
      %v584 = vpop.f32.mrb[0].mxu0
      %v585 = vadd.f32 0.0, %v584
      %v586 = vpop.f32.mrb[0].mxu0
      %587 = vmatprep.mubr.bf16.mxu0 0
      %588 = vmatmul.mubr.bf16.gmra.mrb[0].mxu0 %v450
      %v589 = vpop.f32.mrb[0].mxu0
      %v590 = vadd.f32 0.0, %v589
      %v591 = vpop.f32.mrb[0].mxu0
      %v592 = vpop.f32.mrb[0].mxu0
      %v593 = vadd.f32 0.0, %v592
      %v594 = vpop.f32.mrb[0].mxu0
      %595 = vmatprep.mubr.bf16.mxu0 0
      %596 = vmatmul.mubr.bf16.gmra.mrb[0].mxu0 %v453
      %v597 = vpop.f32.mrb[0].mxu0
      %v598 = vadd.f32 0.0, %v597
      %v599 = vpop.f32.mrb[0].mxu0
      %v600 = vpop.f32.mrb[0].mxu0
      %v601 = vadd.f32 0.0, %v600
      %v602 = vpop.f32.mrb[0].mxu0
      %603 = vmatprep.mubr.bf16.mxu0 0
      %604 = vmatmul.mubr.bf16.gmra.mrb[0].mxu0 %v456
      %v605 = vpop.f32.mrb[0].mxu0
      %v606 = vadd.f32 0.0, %v605
      %v607 = vpop.f32.mrb[0].mxu0
      %v608 = vpop.f32.mrb[0].mxu0
      %v609 = vadd.f32 0.0, %v608
      %v610 = vpop.f32.mrb[0].mxu0
      %611 = vmatprep.mubr.bf16.mxu0 0
      %612 = vmatmul.mubr.bf16.gmra.mrb[0].mxu0 %v459
      %v613 = vpop.f32.mrb[0].mxu0
      %v614 = vadd.f32 0.0, %v613
      %v615 = vpop.f32.mrb[0].mxu0
      %v616 = vpop.f32.mrb[0].mxu0
      %v617 = vadd.f32 0.0, %v616
      %v618 = vpop.f32.mrb[0].mxu0
      %619 = vmatprep.mubr.bf16.mxu0 0
      %620 = vmatmul.mubr.bf16.gmra.mrb[0].mxu0 %v462
      %v621 = vpop.f32.mrb[0].mxu0
      %v622 = vadd.f32 0.0, %v621
      %v623 = vpop.f32.mrb[0].mxu0
      %v624 = vpop.f32.mrb[0].mxu0
      %v625 = vadd.f32 0.0, %v624
      %v626 = vpop.f32.mrb[0].mxu0
      %627 = vmatprep.mubr.bf16.mxu0 0
      %628 = vmatmul.mubr.bf16.gmra.mrb[0].mxu0 %v465
      %v629 = vpop.f32.mrb[0].mxu0
      %v630 = vadd.f32 0.0, %v629
      %v631 = vpop.f32.mrb[0].mxu0
      %v632 = vpop.f32.mrb[0].mxu0
      %v633 = vadd.f32 0.0, %v632
      %v634 = vpop.f32.mrb[0].mxu0
      %635 = vmatprep.mubr.bf16.mxu0 0
      %636 = vmatmul.mubr.bf16.gmra.mrb[0].mxu0 %v468
      %v637 = vpop.f32.mrb[0].mxu0
      %v638 = vadd.f32 0.0, %v637
      %v639 = vpop.f32.mrb[0].mxu0
      %v640 = vpop.f32.mrb[0].mxu0
      %v641 = vadd.f32 0.0, %v640
      %v642 = vpop.f32.mrb[0].mxu0
      %643 = vmatprep.mubr.bf16.mxu0 0
      %644 = vmatmul.mubr.bf16.gmra.mrb[0].mxu0 %v471
      %v645 = vpop.f32.mrb[0].mxu0
      %v646 = vadd.f32 0.0, %v645
      %v647 = vpop.f32.mrb[0].mxu0
      %v648 = vpop.f32.mrb[0].mxu0
      %v649 = vadd.f32 0.0, %v648
      %v650 = vpop.f32.mrb[0].mxu0
      %651 = vmatprep.mubr.bf16.mxu0 0
      %652 = vmatmul.mubr.bf16.gmra.mrb[0].mxu0 %v474
      %v653 = vpop.f32.mrb[0].mxu0
      %v654 = vadd.f32 0.0, %v653
      %v655 = vpop.f32.mrb[0].mxu0
      %v656 = vpop.f32.mrb[0].mxu0
      %v657 = vadd.f32 0.0, %v656
      %v658 = vpop.f32.mrb[0].mxu0
      %659 = vmatprep.mubr.bf16.mxu0 0
      %660 = vmatmul.mubr.bf16.gmra.mrb[0].mxu0 %v477
      %v661 = vpop.f32.mrb[0].mxu0
      %v662 = vadd.f32 0.0, %v661
      %v663 = vpop.f32.mrb[0].mxu0
      %v664 = vpop.f32.mrb[0].mxu0
      %v665 = vadd.f32 0.0, %v664
      %v666 = vpop.f32.mrb[0].mxu0
      %667 = vmatprep.mubr.bf16.mxu0 0
      %668 = vmatmul.mubr.bf16.gmra.mrb[0].mxu0 %v480
      %v669 = vpop.f32.mrb[0].mxu0
      %v670 = vadd.f32 0.0, %v669
      %v671 = vpop.f32.mrb[0].mxu0
      %v672 = vpop.f32.mrb[0].mxu0
      %v673 = vadd.f32 0.0, %v672
      %v674 = vpop.f32.mrb[0].mxu0
      %675 = vmatprep.mubr.bf16.mxu0 0
      %676 = vmatmul.mubr.bf16.gmra.mrb[0].mxu0 %v483
      %v677 = vpop.f32.mrb[0].mxu0
      %v678 = vadd.f32 0.0, %v677
      %v679 = vpop.f32.mrb[0].mxu0
      %v680 = vpop.f32.mrb[0].mxu0
      %v681 = vadd.f32 0.0, %v680
      %v682 = vpop.f32.mrb[0].mxu0
      %683 = vmatprep.mubr.bf16.mxu0 0
      %684 = vmatmul.mubr.bf16.gmra.mrb[0].mxu0 %v486
      %v685 = vpop.f32.mrb[0].mxu0
      %v686 = vadd.f32 0.0, %v685
      %v687 = vpop.f32.mrb[0].mxu0
      %v688 = vpop.f32.mrb[0].mxu0
      %v689 = vadd.f32 0.0, %v688
      %v690 = vpop.f32.mrb[0].mxu0
      %691 = vmatprep.mubr.bf16.mxu0 0
      %692 = vmatmul.mubr.bf16.gmra.mrb[0].mxu0 %v489
      %v693 = vpop.f32.mrb[0].mxu0
      %v694 = vadd.f32 0.0, %v693
      %v695 = vpop.f32.mrb[0].mxu0
      %v696 = vpop.f32.mrb[0].mxu0
      %v697 = vadd.f32 0.0, %v696
      %v698 = vpop.f32.mrb[0].mxu0
      %699 = vmatprep.mubr.bf16.mxu0 0
      %700 = vmatmul.mubr.bf16.gmra.mrb[0].mxu0 %v492
      %v701 = vpop.f32.mrb[0].mxu0
      %v702 = vadd.f32 0.0, %v701
      %v703 = vpop.f32.mrb[0].mxu0
      %v704 = vpop.f32.mrb[0].mxu0
      %v705 = vadd.f32 0.0, %v704
      %v706 = vpop.f32.mrb[0].mxu0
      %707 = vmatprep.mubr.bf16.mxu0 0
      %708 = vmatmul.mubr.bf16.gmra.mrb[0].mxu0 %v495
      %v709 = vpop.f32.mrb[0].mxu0
      %v710 = vadd.f32 0.0, %v709
      %v711 = vpop.f32.mrb[0].mxu0
      %v712 = vpop.f32.mrb[0].mxu0
      %v713 = vadd.f32 0.0, %v712
      %v714 = vpop.f32.mrb[0].mxu0
      %715 = vmatprep.mubr.bf16.mxu0 0
      %716 = vmatmul.mubr.bf16.gmra.mrb[0].mxu0 %v498
      %v717 = vpop.f32.mrb[0].mxu0
      %v718 = vadd.f32 0.0, %v717
      %v719 = vpop.f32.mrb[0].mxu0
      %v720 = vpop.f32.mrb[0].mxu0
      %v721 = vadd.f32 0.0, %v720
      %v722 = vpop.f32.mrb[0].mxu0
      %723 = vmatprep.mubr.bf16.mxu0 0
      %724 = vmatmul.mubr.bf16.gmra.mrb[0].mxu0 %v501
      %v725 = vpop.f32.mrb[0].mxu0
      %v726 = vadd.f32 0.0, %v725
      %v727 = vpop.f32.mrb[0].mxu0
      %v728 = vpop.f32.mrb[0].mxu0
      %v729 = vadd.f32 0.0, %v728
      %v730 = vpop.f32.mrb[0].mxu0
      %731 = vmatprep.mubr.bf16.mxu0 0
      %732 = vmatmul.mubr.bf16.gmra.mrb[0].mxu0 %v504
      %v733 = vpop.f32.mrb[0].mxu0
      %v734 = vadd.f32 0.0, %v733
      %v735 = vpop.f32.mrb[0].mxu0
      %v736 = vpop.f32.mrb[0].mxu0
      %v737 = vadd.f32 0.0, %v736
      %v738 = vpop.f32.mrb[0].mxu0
      %739 = vmatprep.mubr.bf16.mxu0 0
      %740 = vmatmul.mubr.bf16.gmra.mrb[0].mxu0 %v507
      %v741 = vpop.f32.mrb[0].mxu0
      %v742 = vadd.f32 0.0, %v741
      %v743 = vpop.f32.mrb[0].mxu0
      %v744 = vpop.f32.mrb[0].mxu0
      %v745 = vadd.f32 0.0, %v744
      %v746 = vpop.f32.mrb[0].mxu0
      %747 = vmatprep.mubr.bf16.mxu0 0
      %748 = vmatmul.mubr.bf16.gmra.mrb[0].mxu0 %v510
      %v749 = vpop.f32.mrb[0].mxu0
      %v750 = vadd.f32 0.0, %v749
      %v751 = vpop.f32.mrb[0].mxu0
      %v752 = vpop.f32.mrb[0].mxu0
      %v753 = vadd.f32 0.0, %v752
      %v754 = vpop.f32.mrb[0].mxu0
      %755 = vmatprep.mubr.bf16.mxu0 0
      %756 = vmatmul.mubr.bf16.gmra.mrb[0].mxu0 %v513
      %v757 = vpop.f32.mrb[0].mxu0
      %v758 = vadd.f32 0.0, %v757
      %v759 = vpop.f32.mrb[0].mxu0
      %v760 = vpop.f32.mrb[0].mxu0
      %v761 = vadd.f32 0.0, %v760
      %v762 = vpop.f32.mrb[0].mxu0
      %763 = vmatprep.mubr.bf16.mxu0 0
      %764 = vmatmul.mubr.bf16.gmra.mrb[0].mxu0 %v516
      %v765 = vpop.f32.mrb[0].mxu0
      %v766 = vadd.f32 0.0, %v765
      %v767 = vpop.f32.mrb[0].mxu0
      %v768 = vpop.f32.mrb[0].mxu0
      %v769 = vadd.f32 0.0, %v768
      %v770 = vpop.f32.mrb[0].mxu0
      %771 = vmatprep.mubr.bf16.mxu0 0
      %772 = vmatmul.mubr.bf16.gmra.mrb[0].mxu0 %v519
      %v773 = vpop.f32.mrb[0].mxu0
      %v774 = vadd.f32 0.0, %v773
      %v775 = vpop.f32.mrb[0].mxu0
      %v776 = vpop.f32.mrb[0].mxu0
      %v777 = vadd.f32 0.0, %v776
      %v778 = vpop.f32.mrb[0].mxu0
      %779 = vmatprep.mubr.bf16.mxu0 0
      %780 = vmatmul.mubr.bf16.gmra.mrb[0].mxu0 %v522
      %v781 = vpop.f32.mrb[0].mxu0
      %v782 = vadd.f32 0.0, %v781
      %v783 = vpop.f32.mrb[0].mxu0
      %v784 = vpop.f32.mrb[0].mxu0
      %v785 = vadd.f32 0.0, %v784
      %v786 = vpop.f32.mrb[0].mxu0
      %787 = vmatprep.mubr.bf16.mxu0 0
      %788 = vmatmul.mubr.bf16.gmra.mrb[0].mxu0 %v525
      %v789 = vpop.f32.mrb[0].mxu0
      %v790 = vadd.f32 0.0, %v789
      %v791 = vpop.f32.mrb[0].mxu0
      %v792 = vpop.f32.mrb[0].mxu0
      %v793 = vadd.f32 0.0, %v792
      %v794 = vpop.f32.mrb[0].mxu0
      %795 = vmatprep.mubr.bf16.mxu0 0
      %796 = vmatmul.mubr.bf16.gmra.mrb[0].mxu0 %v528
      %v797 = vpop.f32.mrb[0].mxu0
      %v798 = vadd.f32 0.0, %v797
      %v799 = vpop.f32.mrb[0].mxu0
      %v800 = vpop.f32.mrb[0].mxu0
      %v801 = vadd.f32 0.0, %v800
      %v802 = vpop.f32.mrb[0].mxu0
      %803 = vmatprep.mubr.bf16.mxu0 0
      %804 = vmatmul.mubr.bf16.gmra.mrb[0].mxu0 %v531
      %v805 = vpop.f32.mrb[0].mxu0
      %v806 = vadd.f32 0.0, %v805
      %v807 = vpop.f32.mrb[0].mxu0
      %v808 = vpop.f32.mrb[0].mxu0
      %v809 = vadd.f32 0.0, %v808
      %v810 = vpop.f32.mrb[0].mxu0
      %811 = vmatprep.mubr.bf16.mxu0 0
      %812 = vmatmul.mubr.bf16.gmra.mrb[0].mxu0 %v534
      %v813 = vpop.f32.mrb[0].mxu0
      %v814 = vadd.f32 0.0, %v813
      %v815 = vpop.f32.mrb[0].mxu0
      %v816 = vpop.f32.mrb[0].mxu0
      %v817 = vadd.f32 0.0, %v816
      %v818 = vpop.f32.mrb[0].mxu0
      %819 = vmatprep.mubr.bf16.mxu0 0
      %820 = vmatmul.mubr.bf16.gmra.mrb[0].mxu0 %v537
      %v821 = vpop.f32.mrb[0].mxu0
      %v822 = vadd.f32 0.0, %v821
      %v823 = vpop.f32.mrb[0].mxu0
      %v824 = vpop.f32.mrb[0].mxu0
      %v825 = vadd.f32 0.0, %v824
      %v826 = vpop.f32.mrb[0].mxu0
      %827 = vdwg.mxu0
      %v828 = vld [vmem:[%s2] sm:$0x1]
      %v830 = vlaneseq
      %v831 = vshrl.u32 %v830, 7
      %v832 = vsub.s32 0, %v831
      %v833 = vrot.slane %v828, %v832
      %v835 = vmul.f32 %v574, %v833
      %v836 = vmul.f32 %v577, %v833
      %v837 = vmul.f32 %v582, %v833
      %v838 = vmul.f32 %v585, %v833
      %v839 = vmul.f32 %v590, %v833
      %v840 = vmul.f32 %v593, %v833
      %v841 = vmul.f32 %v598, %v833
      %v842 = vmul.f32 %v601, %v833
      %v843 = vmul.f32 %v606, %v833
      %v844 = vmul.f32 %v609, %v833
      %v845 = vmul.f32 %v614, %v833
      %v846 = vmul.f32 %v617, %v833
      %v847 = vmul.f32 %v622, %v833
      %v848 = vmul.f32 %v625, %v833
      %v849 = vmul.f32 %v630, %v833
      %v850 = vmul.f32 %v633, %v833
      %v851 = vmul.f32 %v638, %v833
      %v852 = vmul.f32 %v641, %v833
      %v853 = vmul.f32 %v646, %v833
      %v854 = vmul.f32 %v649, %v833
      %v855 = vmul.f32 %v654, %v833
      %v856 = vmul.f32 %v657, %v833
      %v857 = vmul.f32 %v662, %v833
      %v858 = vmul.f32 %v665, %v833
      %v859 = vmul.f32 %v670, %v833
      %v860 = vmul.f32 %v673, %v833
      %v861 = vmul.f32 %v678, %v833
      %v862 = vmul.f32 %v681, %v833
      %v863 = vmul.f32 %v686, %v833
      %v864 = vmul.f32 %v689, %v833
      %v865 = vmul.f32 %v694, %v833
      %v866 = vmul.f32 %v697, %v833
      %v867 = vmul.f32 %v702, %v833
      %v868 = vmul.f32 %v705, %v833
      %v869 = vmul.f32 %v710, %v833
      %v870 = vmul.f32 %v713, %v833
      %v871 = vmul.f32 %v718, %v833
      %v872 = vmul.f32 %v721, %v833
      %v873 = vmul.f32 %v726, %v833
      %v874 = vmul.f32 %v729, %v833
      %v875 = vmul.f32 %v734, %v833
      %v876 = vmul.f32 %v737, %v833
      %v877 = vmul.f32 %v742, %v833
      %v878 = vmul.f32 %v745, %v833
      %v879 = vmul.f32 %v750, %v833
      %v880 = vmul.f32 %v753, %v833
      %v881 = vmul.f32 %v758, %v833
      %v882 = vmul.f32 %v761, %v833
      %v883 = vmul.f32 %v766, %v833
      %v884 = vmul.f32 %v769, %v833
      %v885 = vmul.f32 %v774, %v833
      %v886 = vmul.f32 %v777, %v833
      %v887 = vmul.f32 %v782, %v833
      %v888 = vmul.f32 %v785, %v833
      %v889 = vmul.f32 %v790, %v833
      %v890 = vmul.f32 %v793, %v833
      %v891 = vmul.f32 %v798, %v833
      %v892 = vmul.f32 %v801, %v833
      %v893 = vmul.f32 %v806, %v833
      %v894 = vmul.f32 %v809, %v833
      %v895 = vmul.f32 %v814, %v833
      %v896 = vmul.f32 %v817, %v833
      %v897 = vmul.f32 %v822, %v833
      %v898 = vmul.f32 %v825, %v833
      %v899 = vld [vmem:[%s3] sm:$0x1]
      %v901 = vlaneseq
      %v902 = vshrl.u32 %v901, 7
      %v903 = vsub.s32 0, %v902
      %v904 = vrot.slane %v899, %v903
      %v906 = vadd.f32 %v835, %v904
      %v907 = vadd.f32 %v836, %v904
      %v908 = vadd.f32 %v837, %v904
      %v909 = vadd.f32 %v838, %v904
      %v910 = vadd.f32 %v839, %v904
      %v911 = vadd.f32 %v840, %v904
      %v912 = vadd.f32 %v841, %v904
      %v913 = vadd.f32 %v842, %v904
      %v914 = vadd.f32 %v843, %v904
      %v915 = vadd.f32 %v844, %v904
      %v916 = vadd.f32 %v845, %v904
      %v917 = vadd.f32 %v846, %v904
      %v918 = vadd.f32 %v847, %v904
      %v919 = vadd.f32 %v848, %v904
      %v920 = vadd.f32 %v849, %v904
      %v921 = vadd.f32 %v850, %v904
      %v922 = vadd.f32 %v851, %v904
      %v923 = vadd.f32 %v852, %v904
      %v924 = vadd.f32 %v853, %v904
      %v925 = vadd.f32 %v854, %v904
      %v926 = vadd.f32 %v855, %v904
      %v927 = vadd.f32 %v856, %v904
      %v928 = vadd.f32 %v857, %v904
      %v929 = vadd.f32 %v858, %v904
      %v930 = vadd.f32 %v859, %v904
      %v931 = vadd.f32 %v860, %v904
      %v932 = vadd.f32 %v861, %v904
      %v933 = vadd.f32 %v862, %v904
      %v934 = vadd.f32 %v863, %v904
      %v935 = vadd.f32 %v864, %v904
      %v936 = vadd.f32 %v865, %v904
      %v937 = vadd.f32 %v866, %v904
      %v938 = vadd.f32 %v867, %v904
      %v939 = vadd.f32 %v868, %v904
      %v940 = vadd.f32 %v869, %v904
      %v941 = vadd.f32 %v870, %v904
      %v942 = vadd.f32 %v871, %v904
      %v943 = vadd.f32 %v872, %v904
      %v944 = vadd.f32 %v873, %v904
      %v945 = vadd.f32 %v874, %v904
      %v946 = vadd.f32 %v875, %v904
      %v947 = vadd.f32 %v876, %v904
      %v948 = vadd.f32 %v877, %v904
      %v949 = vadd.f32 %v878, %v904
      %v950 = vadd.f32 %v879, %v904
      %v951 = vadd.f32 %v880, %v904
      %v952 = vadd.f32 %v881, %v904
      %v953 = vadd.f32 %v882, %v904
      %v954 = vadd.f32 %v883, %v904
      %v955 = vadd.f32 %v884, %v904
      %v956 = vadd.f32 %v885, %v904
      %v957 = vadd.f32 %v886, %v904
      %v958 = vadd.f32 %v887, %v904
      %v959 = vadd.f32 %v888, %v904
      %v960 = vadd.f32 %v889, %v904
      %v961 = vadd.f32 %v890, %v904
      %v962 = vadd.f32 %v891, %v904
      %v963 = vadd.f32 %v892, %v904
      %v964 = vadd.f32 %v893, %v904
      %v965 = vadd.f32 %v894, %v904
      %v966 = vadd.f32 %v895, %v904
      %v967 = vadd.f32 %v896, %v904
      %v968 = vadd.f32 %v897, %v904
      %v969 = vadd.f32 %v898, %v904
      %v970 = vxor.u32 %v906, 2147483648
      %v971 = vxor.u32 %v907, 2147483648
      %v972 = vxor.u32 %v908, 2147483648
      %v973 = vxor.u32 %v909, 2147483648
      %v974 = vxor.u32 %v910, 2147483648
      %v975 = vxor.u32 %v911, 2147483648
      %v976 = vxor.u32 %v912, 2147483648
      %v977 = vxor.u32 %v913, 2147483648
      %v978 = vxor.u32 %v914, 2147483648
      %v979 = vxor.u32 %v915, 2147483648
      %v980 = vxor.u32 %v916, 2147483648
      %v981 = vxor.u32 %v917, 2147483648
      %v982 = vxor.u32 %v918, 2147483648
      %v983 = vxor.u32 %v919, 2147483648
      %v984 = vxor.u32 %v920, 2147483648
      %v985 = vxor.u32 %v921, 2147483648
      %v986 = vxor.u32 %v922, 2147483648
      %v987 = vxor.u32 %v923, 2147483648
      %v988 = vxor.u32 %v924, 2147483648
      %v989 = vxor.u32 %v925, 2147483648
      %v990 = vxor.u32 %v926, 2147483648
      %v991 = vxor.u32 %v927, 2147483648
      %v992 = vxor.u32 %v928, 2147483648
      %v993 = vxor.u32 %v929, 2147483648
      %v994 = vxor.u32 %v930, 2147483648
      %v995 = vxor.u32 %v931, 2147483648
      %v996 = vxor.u32 %v932, 2147483648
      %v997 = vxor.u32 %v933, 2147483648
      %v998 = vxor.u32 %v934, 2147483648
      %v999 = vxor.u32 %v935, 2147483648
      %v1000 = vxor.u32 %v936, 2147483648
      %v1001 = vxor.u32 %v937, 2147483648
      %v1002 = vxor.u32 %v938, 2147483648
      %v1003 = vxor.u32 %v939, 2147483648
      %v1004 = vxor.u32 %v940, 2147483648
      %v1005 = vxor.u32 %v941, 2147483648
      %v1006 = vxor.u32 %v942, 2147483648
      %v1007 = vxor.u32 %v943, 2147483648
      %v1008 = vxor.u32 %v944, 2147483648
      %v1009 = vxor.u32 %v945, 2147483648
      %v1010 = vxor.u32 %v946, 2147483648
      %v1011 = vxor.u32 %v947, 2147483648
      %v1012 = vxor.u32 %v948, 2147483648
      %v1013 = vxor.u32 %v949, 2147483648
      %v1014 = vxor.u32 %v950, 2147483648
      %v1015 = vxor.u32 %v951, 2147483648
      %v1016 = vxor.u32 %v952, 2147483648
      %v1017 = vxor.u32 %v953, 2147483648
      %v1018 = vxor.u32 %v954, 2147483648
      %v1019 = vxor.u32 %v955, 2147483648
      %v1020 = vxor.u32 %v956, 2147483648
      %v1021 = vxor.u32 %v957, 2147483648
      %v1022 = vxor.u32 %v958, 2147483648
      %v1023 = vxor.u32 %v959, 2147483648
      %v1024 = vxor.u32 %v960, 2147483648
      %v1025 = vxor.u32 %v961, 2147483648
      %v1026 = vxor.u32 %v962, 2147483648
      %v1027 = vxor.u32 %v963, 2147483648
      %v1028 = vxor.u32 %v964, 2147483648
      %v1029 = vxor.u32 %v965, 2147483648
      %v1030 = vxor.u32 %v966, 2147483648
      %v1031 = vxor.u32 %v967, 2147483648
      %v1032 = vxor.u32 %v968, 2147483648
      %v1033 = vxor.u32 %v969, 2147483648
      %v1034 = vmul.f32 %v970, 1.442695
      %v1035 = vpow.pop %v1034
      %v1036 = vmul.f32 %v971, 1.442695
      %v1037 = vpow.pop %v1036
      %v1038 = vmul.f32 %v972, 1.442695
      %v1039 = vpow.pop %v1038
      %v1040 = vmul.f32 %v973, 1.442695
      %v1041 = vpow.pop %v1040
      %v1042 = vmul.f32 %v974, 1.442695
      %v1043 = vpow.pop %v1042
      %v1044 = vmul.f32 %v975, 1.442695
      %v1045 = vpow.pop %v1044
      %v1046 = vmul.f32 %v976, 1.442695
      %v1047 = vpow.pop %v1046
      %v1048 = vmul.f32 %v977, 1.442695
      %v1049 = vpow.pop %v1048
      %v1050 = vmul.f32 %v978, 1.442695
      %v1051 = vpow.pop %v1050
      %v1052 = vmul.f32 %v979, 1.442695
      %v1053 = vpow.pop %v1052
      %v1054 = vmul.f32 %v980, 1.442695
      %v1055 = vpow.pop %v1054
      %v1056 = vmul.f32 %v981, 1.442695
      %v1057 = vpow.pop %v1056
      %v1058 = vmul.f32 %v982, 1.442695
      %v1059 = vpow.pop %v1058
      %v1060 = vmul.f32 %v983, 1.442695
      %v1061 = vpow.pop %v1060
      %v1062 = vmul.f32 %v984, 1.442695
      %v1063 = vpow.pop %v1062
      %v1064 = vmul.f32 %v985, 1.442695
      %v1065 = vpow.pop %v1064
      %v1066 = vmul.f32 %v986, 1.442695
      %v1067 = vpow.pop %v1066
      %v1068 = vmul.f32 %v987, 1.442695
      %v1069 = vpow.pop %v1068
      %v1070 = vmul.f32 %v988, 1.442695
      %v1071 = vpow.pop %v1070
      %v1072 = vmul.f32 %v989, 1.442695
      %v1073 = vpow.pop %v1072
      %v1074 = vmul.f32 %v990, 1.442695
      %v1075 = vpow.pop %v1074
      %v1076 = vmul.f32 %v991, 1.442695
      %v1077 = vpow.pop %v1076
      %v1078 = vmul.f32 %v992, 1.442695
      %v1079 = vpow.pop %v1078
      %v1080 = vmul.f32 %v993, 1.442695
      %v1081 = vpow.pop %v1080
      %v1082 = vmul.f32 %v994, 1.442695
      %v1083 = vpow.pop %v1082
      %v1084 = vmul.f32 %v995, 1.442695
      %v1085 = vpow.pop %v1084
      %v1086 = vmul.f32 %v996, 1.442695
      %v1087 = vpow.pop %v1086
      %v1088 = vmul.f32 %v997, 1.442695
      %v1089 = vpow.pop %v1088
      %v1090 = vmul.f32 %v998, 1.442695
      %v1091 = vpow.pop %v1090
      %v1092 = vmul.f32 %v999, 1.442695
      %v1093 = vpow.pop %v1092
      %v1094 = vmul.f32 %v1000, 1.442695
      %v1095 = vpow.pop %v1094
      %v1096 = vmul.f32 %v1001, 1.442695
      %v1097 = vpow.pop %v1096
      %v1098 = vmul.f32 %v1002, 1.442695
      %v1099 = vpow.pop %v1098
      %v1100 = vmul.f32 %v1003, 1.442695
      %v1101 = vpow.pop %v1100
      %v1102 = vmul.f32 %v1004, 1.442695
      %v1103 = vpow.pop %v1102
      %v1104 = vmul.f32 %v1005, 1.442695
      %v1105 = vpow.pop %v1104
      %v1106 = vmul.f32 %v1006, 1.442695
      %v1107 = vpow.pop %v1106
      %v1108 = vmul.f32 %v1007, 1.442695
      %v1109 = vpow.pop %v1108
      %v1110 = vmul.f32 %v1008, 1.442695
      %v1111 = vpow.pop %v1110
      %v1112 = vmul.f32 %v1009, 1.442695
      %v1113 = vpow.pop %v1112
      %v1114 = vmul.f32 %v1010, 1.442695
      %v1115 = vpow.pop %v1114
      %v1116 = vmul.f32 %v1011, 1.442695
      %v1117 = vpow.pop %v1116
      %v1118 = vmul.f32 %v1012, 1.442695
      %v1119 = vpow.pop %v1118
      %v1120 = vmul.f32 %v1013, 1.442695
      %v1121 = vpow.pop %v1120
      %v1122 = vmul.f32 %v1014, 1.442695
      %v1123 = vpow.pop %v1122
      %v1124 = vmul.f32 %v1015, 1.442695
      %v1125 = vpow.pop %v1124
      %v1126 = vmul.f32 %v1016, 1.442695
      %v1127 = vpow.pop %v1126
      %v1128 = vmul.f32 %v1017, 1.442695
      %v1129 = vpow.pop %v1128
      %v1130 = vmul.f32 %v1018, 1.442695
      %v1131 = vpow.pop %v1130
      %v1132 = vmul.f32 %v1019, 1.442695
      %v1133 = vpow.pop %v1132
      %v1134 = vmul.f32 %v1020, 1.442695
      %v1135 = vpow.pop %v1134
      %v1136 = vmul.f32 %v1021, 1.442695
      %v1137 = vpow.pop %v1136
      %v1138 = vmul.f32 %v1022, 1.442695
      %v1139 = vpow.pop %v1138
      %v1140 = vmul.f32 %v1023, 1.442695
      %v1141 = vpow.pop %v1140
      %v1142 = vmul.f32 %v1024, 1.442695
      %v1143 = vpow.pop %v1142
      %v1144 = vmul.f32 %v1025, 1.442695
      %v1145 = vpow.pop %v1144
      %v1146 = vmul.f32 %v1026, 1.442695
      %v1147 = vpow.pop %v1146
      %v1148 = vmul.f32 %v1027, 1.442695
      %v1149 = vpow.pop %v1148
      %v1150 = vmul.f32 %v1028, 1.442695
      %v1151 = vpow.pop %v1150
      %v1152 = vmul.f32 %v1029, 1.442695
      %v1153 = vpow.pop %v1152
      %v1154 = vmul.f32 %v1030, 1.442695
      %v1155 = vpow.pop %v1154
      %v1156 = vmul.f32 %v1031, 1.442695
      %v1157 = vpow.pop %v1156
      %v1158 = vmul.f32 %v1032, 1.442695
      %v1159 = vpow.pop %v1158
      %v1160 = vmul.f32 %v1033, 1.442695
      %v1161 = vpow.pop %v1160
      %v1162 = vadd.f32 %v1035, 1.0
      %v1163 = vadd.f32 %v1037, 1.0
      %v1164 = vadd.f32 %v1039, 1.0
      %v1165 = vadd.f32 %v1041, 1.0
      %v1166 = vadd.f32 %v1043, 1.0
      %v1167 = vadd.f32 %v1045, 1.0
      %v1168 = vadd.f32 %v1047, 1.0
      %v1169 = vadd.f32 %v1049, 1.0
      %v1170 = vadd.f32 %v1051, 1.0
      %v1171 = vadd.f32 %v1053, 1.0
      %v1172 = vadd.f32 %v1055, 1.0
      %v1173 = vadd.f32 %v1057, 1.0
      %v1174 = vadd.f32 %v1059, 1.0
      %v1175 = vadd.f32 %v1061, 1.0
      %v1176 = vadd.f32 %v1063, 1.0
      %v1177 = vadd.f32 %v1065, 1.0
      %v1178 = vadd.f32 %v1067, 1.0
      %v1179 = vadd.f32 %v1069, 1.0
      %v1180 = vadd.f32 %v1071, 1.0
      %v1181 = vadd.f32 %v1073, 1.0
      %v1182 = vadd.f32 %v1075, 1.0
      %v1183 = vadd.f32 %v1077, 1.0
      %v1184 = vadd.f32 %v1079, 1.0
      %v1185 = vadd.f32 %v1081, 1.0
      %v1186 = vadd.f32 %v1083, 1.0
      %v1187 = vadd.f32 %v1085, 1.0
      %v1188 = vadd.f32 %v1087, 1.0
      %v1189 = vadd.f32 %v1089, 1.0
      %v1190 = vadd.f32 %v1091, 1.0
      %v1191 = vadd.f32 %v1093, 1.0
      %v1192 = vadd.f32 %v1095, 1.0
      %v1193 = vadd.f32 %v1097, 1.0
      %v1194 = vadd.f32 %v1099, 1.0
      %v1195 = vadd.f32 %v1101, 1.0
      %v1196 = vadd.f32 %v1103, 1.0
      %v1197 = vadd.f32 %v1105, 1.0
      %v1198 = vadd.f32 %v1107, 1.0
      %v1199 = vadd.f32 %v1109, 1.0
      %v1200 = vadd.f32 %v1111, 1.0
      %v1201 = vadd.f32 %v1113, 1.0
      %v1202 = vadd.f32 %v1115, 1.0
      %v1203 = vadd.f32 %v1117, 1.0
      %v1204 = vadd.f32 %v1119, 1.0
      %v1205 = vadd.f32 %v1121, 1.0
      %v1206 = vadd.f32 %v1123, 1.0
      %v1207 = vadd.f32 %v1125, 1.0
      %v1208 = vadd.f32 %v1127, 1.0
      %v1209 = vadd.f32 %v1129, 1.0
      %v1210 = vadd.f32 %v1131, 1.0
      %v1211 = vadd.f32 %v1133, 1.0
      %v1212 = vadd.f32 %v1135, 1.0
      %v1213 = vadd.f32 %v1137, 1.0
      %v1214 = vadd.f32 %v1139, 1.0
      %v1215 = vadd.f32 %v1141, 1.0
      %v1216 = vadd.f32 %v1143, 1.0
      %v1217 = vadd.f32 %v1145, 1.0
      %v1218 = vadd.f32 %v1147, 1.0
      %v1219 = vadd.f32 %v1149, 1.0
      %v1220 = vadd.f32 %v1151, 1.0
      %v1221 = vadd.f32 %v1153, 1.0
      %v1222 = vadd.f32 %v1155, 1.0
      %v1223 = vadd.f32 %v1157, 1.0
      %v1224 = vadd.f32 %v1159, 1.0
      %v1225 = vadd.f32 %v1161, 1.0
      %v1226 = vrcp.pop %v1162
      %v1227 = vmul.f32 1.0, %v1226
      %v1228 = vrcp.pop %v1163
      %v1229 = vmul.f32 1.0, %v1228
      %v1230 = vrcp.pop %v1164
      %v1231 = vmul.f32 1.0, %v1230
      %v1232 = vrcp.pop %v1165
      %v1233 = vmul.f32 1.0, %v1232
      %v1234 = vrcp.pop %v1166
      %v1235 = vmul.f32 1.0, %v1234
      %v1236 = vrcp.pop %v1167
      %v1237 = vmul.f32 1.0, %v1236
      %v1238 = vrcp.pop %v1168
      %v1239 = vmul.f32 1.0, %v1238
      %v1240 = vrcp.pop %v1169
      %v1241 = vmul.f32 1.0, %v1240
      %v1242 = vrcp.pop %v1170
      %v1243 = vmul.f32 1.0, %v1242
      %v1244 = vrcp.pop %v1171
      %v1245 = vmul.f32 1.0, %v1244
      %v1246 = vrcp.pop %v1172
      %v1247 = vmul.f32 1.0, %v1246
      %v1248 = vrcp.pop %v1173
      %v1249 = vmul.f32 1.0, %v1248
      %v1250 = vrcp.pop %v1174
      %v1251 = vmul.f32 1.0, %v1250
      %v1252 = vrcp.pop %v1175
      %v1253 = vmul.f32 1.0, %v1252
      %v1254 = vrcp.pop %v1176
      %v1255 = vmul.f32 1.0, %v1254
      %v1256 = vrcp.pop %v1177
      %v1257 = vmul.f32 1.0, %v1256
      %v1258 = vrcp.pop %v1178
      %v1259 = vmul.f32 1.0, %v1258
      %v1260 = vrcp.pop %v1179
      %v1261 = vmul.f32 1.0, %v1260
      %v1262 = vrcp.pop %v1180
      %v1263 = vmul.f32 1.0, %v1262
      %v1264 = vrcp.pop %v1181
      %v1265 = vmul.f32 1.0, %v1264
      %v1266 = vrcp.pop %v1182
      %v1267 = vmul.f32 1.0, %v1266
      %v1268 = vrcp.pop %v1183
      %v1269 = vmul.f32 1.0, %v1268
      %v1270 = vrcp.pop %v1184
      %v1271 = vmul.f32 1.0, %v1270
      %v1272 = vrcp.pop %v1185
      %v1273 = vmul.f32 1.0, %v1272
      %v1274 = vrcp.pop %v1186
      %v1275 = vmul.f32 1.0, %v1274
      %v1276 = vrcp.pop %v1187
      %v1277 = vmul.f32 1.0, %v1276
      %v1278 = vrcp.pop %v1188
      %v1279 = vmul.f32 1.0, %v1278
      %v1280 = vrcp.pop %v1189
      %v1281 = vmul.f32 1.0, %v1280
      %v1282 = vrcp.pop %v1190
      %v1283 = vmul.f32 1.0, %v1282
      %v1284 = vrcp.pop %v1191
      %v1285 = vmul.f32 1.0, %v1284
      %v1286 = vrcp.pop %v1192
      %v1287 = vmul.f32 1.0, %v1286
      %v1288 = vrcp.pop %v1193
      %v1289 = vmul.f32 1.0, %v1288
      %v1290 = vrcp.pop %v1194
      %v1291 = vmul.f32 1.0, %v1290
      %v1292 = vrcp.pop %v1195
      %v1293 = vmul.f32 1.0, %v1292
      %v1294 = vrcp.pop %v1196
      %v1295 = vmul.f32 1.0, %v1294
      %v1296 = vrcp.pop %v1197
      %v1297 = vmul.f32 1.0, %v1296
      %v1298 = vrcp.pop %v1198
      %v1299 = vmul.f32 1.0, %v1298
      %v1300 = vrcp.pop %v1199
      %v1301 = vmul.f32 1.0, %v1300
      %v1302 = vrcp.pop %v1200
      %v1303 = vmul.f32 1.0, %v1302
      %v1304 = vrcp.pop %v1201
      %v1305 = vmul.f32 1.0, %v1304
      %v1306 = vrcp.pop %v1202
      %v1307 = vmul.f32 1.0, %v1306
      %v1308 = vrcp.pop %v1203
      %v1309 = vmul.f32 1.0, %v1308
      %v1310 = vrcp.pop %v1204
      %v1311 = vmul.f32 1.0, %v1310
      %v1312 = vrcp.pop %v1205
      %v1313 = vmul.f32 1.0, %v1312
      %v1314 = vrcp.pop %v1206
      %v1315 = vmul.f32 1.0, %v1314
      %v1316 = vrcp.pop %v1207
      %v1317 = vmul.f32 1.0, %v1316
      %v1318 = vrcp.pop %v1208
      %v1319 = vmul.f32 1.0, %v1318
      %v1320 = vrcp.pop %v1209
      %v1321 = vmul.f32 1.0, %v1320
      %v1322 = vrcp.pop %v1210
      %v1323 = vmul.f32 1.0, %v1322
      %v1324 = vrcp.pop %v1211
      %v1325 = vmul.f32 1.0, %v1324
      %v1326 = vrcp.pop %v1212
      %v1327 = vmul.f32 1.0, %v1326
      %v1328 = vrcp.pop %v1213
      %v1329 = vmul.f32 1.0, %v1328
      %v1330 = vrcp.pop %v1214
      %v1331 = vmul.f32 1.0, %v1330
      %v1332 = vrcp.pop %v1215
      %v1333 = vmul.f32 1.0, %v1332
      %v1334 = vrcp.pop %v1216
      %v1335 = vmul.f32 1.0, %v1334
      %v1336 = vrcp.pop %v1217
      %v1337 = vmul.f32 1.0, %v1336
      %v1338 = vrcp.pop %v1218
      %v1339 = vmul.f32 1.0, %v1338
      %v1340 = vrcp.pop %v1219
      %v1341 = vmul.f32 1.0, %v1340
      %v1342 = vrcp.pop %v1220
      %v1343 = vmul.f32 1.0, %v1342
      %v1344 = vrcp.pop %v1221
      %v1345 = vmul.f32 1.0, %v1344
      %v1346 = vrcp.pop %v1222
      %v1347 = vmul.f32 1.0, %v1346
      %v1348 = vrcp.pop %v1223
      %v1349 = vmul.f32 1.0, %v1348
      %v1350 = vrcp.pop %v1224
      %v1351 = vmul.f32 1.0, %v1350
      %v1352 = vrcp.pop %v1225
      %v1353 = vmul.f32 1.0, %v1352
      %v1354 = vmul.f32 %v906, %v1227
      %v1355 = vmul.f32 %v907, %v1229
      %v1356 = vmul.f32 %v908, %v1231
      %v1357 = vmul.f32 %v909, %v1233
      %v1358 = vmul.f32 %v910, %v1235
      %v1359 = vmul.f32 %v911, %v1237
      %v1360 = vmul.f32 %v912, %v1239
      %v1361 = vmul.f32 %v913, %v1241
      %v1362 = vmul.f32 %v914, %v1243
      %v1363 = vmul.f32 %v915, %v1245
      %v1364 = vmul.f32 %v916, %v1247
      %v1365 = vmul.f32 %v917, %v1249
      %v1366 = vmul.f32 %v918, %v1251
      %v1367 = vmul.f32 %v919, %v1253
      %v1368 = vmul.f32 %v920, %v1255
      %v1369 = vmul.f32 %v921, %v1257
      %v1370 = vmul.f32 %v922, %v1259
      %v1371 = vmul.f32 %v923, %v1261
      %v1372 = vmul.f32 %v924, %v1263
      %v1373 = vmul.f32 %v925, %v1265
      %v1374 = vmul.f32 %v926, %v1267
      %v1375 = vmul.f32 %v927, %v1269
      %v1376 = vmul.f32 %v928, %v1271
      %v1377 = vmul.f32 %v929, %v1273
      %v1378 = vmul.f32 %v930, %v1275
      %v1379 = vmul.f32 %v931, %v1277
      %v1380 = vmul.f32 %v932, %v1279
      %v1381 = vmul.f32 %v933, %v1281
      %v1382 = vmul.f32 %v934, %v1283
      %v1383 = vmul.f32 %v935, %v1285
      %v1384 = vmul.f32 %v936, %v1287
      %v1385 = vmul.f32 %v937, %v1289
      %v1386 = vmul.f32 %v938, %v1291
      %v1387 = vmul.f32 %v939, %v1293
      %v1388 = vmul.f32 %v940, %v1295
      %v1389 = vmul.f32 %v941, %v1297
      %v1390 = vmul.f32 %v942, %v1299
      %v1391 = vmul.f32 %v943, %v1301
      %v1392 = vmul.f32 %v944, %v1303
      %v1393 = vmul.f32 %v945, %v1305
      %v1394 = vmul.f32 %v946, %v1307
      %v1395 = vmul.f32 %v947, %v1309
      %v1396 = vmul.f32 %v948, %v1311
      %v1397 = vmul.f32 %v949, %v1313
      %v1398 = vmul.f32 %v950, %v1315
      %v1399 = vmul.f32 %v951, %v1317
      %v1400 = vmul.f32 %v952, %v1319
      %v1401 = vmul.f32 %v953, %v1321
      %v1402 = vmul.f32 %v954, %v1323
      %v1403 = vmul.f32 %v955, %v1325
      %v1404 = vmul.f32 %v956, %v1327
      %v1405 = vmul.f32 %v957, %v1329
      %v1406 = vmul.f32 %v958, %v1331
      %v1407 = vmul.f32 %v959, %v1333
      %v1408 = vmul.f32 %v960, %v1335
      %v1409 = vmul.f32 %v961, %v1337
      %v1410 = vmul.f32 %v962, %v1339
      %v1411 = vmul.f32 %v963, %v1341
      %v1412 = vmul.f32 %v964, %v1343
      %v1413 = vmul.f32 %v965, %v1345
      %v1414 = vmul.f32 %v966, %v1347
      %v1415 = vmul.f32 %v967, %v1349
      %v1416 = vmul.f32 %v968, %v1351
      %v1417 = vmul.f32 %v969, %v1353
      %v1418 = vpack.c.bf16 %v1355, %v1354
      %v1419 = vpack.c.bf16 %v1357, %v1356
      %v1420 = vpack.c.bf16 %v1359, %v1358
      %v1421 = vpack.c.bf16 %v1361, %v1360
      %v1422 = vpack.c.bf16 %v1363, %v1362
      %v1423 = vpack.c.bf16 %v1365, %v1364
      %v1424 = vpack.c.bf16 %v1367, %v1366
      %v1425 = vpack.c.bf16 %v1369, %v1368
      %v1426 = vpack.c.bf16 %v1371, %v1370
      %v1427 = vpack.c.bf16 %v1373, %v1372
      %v1428 = vpack.c.bf16 %v1375, %v1374
      %v1429 = vpack.c.bf16 %v1377, %v1376
      %v1430 = vpack.c.bf16 %v1379, %v1378
      %v1431 = vpack.c.bf16 %v1381, %v1380
      %v1432 = vpack.c.bf16 %v1383, %v1382
      %v1433 = vpack.c.bf16 %v1385, %v1384
      %v1434 = vpack.c.bf16 %v1387, %v1386
      %v1435 = vpack.c.bf16 %v1389, %v1388
      %v1436 = vpack.c.bf16 %v1391, %v1390
      %v1437 = vpack.c.bf16 %v1393, %v1392
      %v1438 = vpack.c.bf16 %v1395, %v1394
      %v1439 = vpack.c.bf16 %v1397, %v1396
      %v1440 = vpack.c.bf16 %v1399, %v1398
      %v1441 = vpack.c.bf16 %v1401, %v1400
      %v1442 = vpack.c.bf16 %v1403, %v1402
      %v1443 = vpack.c.bf16 %v1405, %v1404
      %v1444 = vpack.c.bf16 %v1407, %v1406
      %v1445 = vpack.c.bf16 %v1409, %v1408
      %v1446 = vpack.c.bf16 %v1411, %v1410
      %v1447 = vpack.c.bf16 %v1413, %v1412
      %v1448 = vpack.c.bf16 %v1415, %v1414
      %v1449 = vpack.c.bf16 %v1417, %v1416
      %v1482 = vunpack.c.l.b16 %v1418
      %v1483 = vunpack.c.h.b16 %v1418
      %v1484 = vunpack.c.l.b16 %v1419
      %v1485 = vunpack.c.h.b16 %v1419
      %v1486 = vunpack.c.l.b16 %v1420
      %v1487 = vunpack.c.h.b16 %v1420
      %v1488 = vunpack.c.l.b16 %v1421
      %v1489 = vunpack.c.h.b16 %v1421
      %v1490 = vunpack.c.l.b16 %v1422
      %v1491 = vunpack.c.h.b16 %v1422
      %v1492 = vunpack.c.l.b16 %v1423
      %v1493 = vunpack.c.h.b16 %v1423
      %v1494 = vunpack.c.l.b16 %v1424
      %v1495 = vunpack.c.h.b16 %v1424
      %v1496 = vunpack.c.l.b16 %v1425
      %v1497 = vunpack.c.h.b16 %v1425
      %v1498 = vunpack.c.l.b16 %v1426
      %v1499 = vunpack.c.h.b16 %v1426
      %v1500 = vunpack.c.l.b16 %v1427
      %v1501 = vunpack.c.h.b16 %v1427
      %v1502 = vunpack.c.l.b16 %v1428
      %v1503 = vunpack.c.h.b16 %v1428
      %v1504 = vunpack.c.l.b16 %v1429
      %v1505 = vunpack.c.h.b16 %v1429
      %v1506 = vunpack.c.l.b16 %v1430
      %v1507 = vunpack.c.h.b16 %v1430
      %v1508 = vunpack.c.l.b16 %v1431
      %v1509 = vunpack.c.h.b16 %v1431
      %v1510 = vunpack.c.l.b16 %v1432
      %v1511 = vunpack.c.h.b16 %v1432
      %v1512 = vunpack.c.l.b16 %v1433
      %v1513 = vunpack.c.h.b16 %v1433
      %v1514 = vunpack.c.l.b16 %v1434
      %v1515 = vunpack.c.h.b16 %v1434
      %v1516 = vunpack.c.l.b16 %v1435
      %v1517 = vunpack.c.h.b16 %v1435
      %v1518 = vunpack.c.l.b16 %v1436
      %v1519 = vunpack.c.h.b16 %v1436
      %v1520 = vunpack.c.l.b16 %v1437
      %v1521 = vunpack.c.h.b16 %v1437
      %v1522 = vunpack.c.l.b16 %v1438
      %v1523 = vunpack.c.h.b16 %v1438
      %v1524 = vunpack.c.l.b16 %v1439
      %v1525 = vunpack.c.h.b16 %v1439
      %v1526 = vunpack.c.l.b16 %v1440
      %v1527 = vunpack.c.h.b16 %v1440
      %v1528 = vunpack.c.l.b16 %v1441
      %v1529 = vunpack.c.h.b16 %v1441
      %v1530 = vunpack.c.l.b16 %v1442
      %v1531 = vunpack.c.h.b16 %v1442
      %v1532 = vunpack.c.l.b16 %v1443
      %v1533 = vunpack.c.h.b16 %v1443
      %v1534 = vunpack.c.l.b16 %v1444
      %v1535 = vunpack.c.h.b16 %v1444
      %v1536 = vunpack.c.l.b16 %v1445
      %v1537 = vunpack.c.h.b16 %v1445
      %v1538 = vunpack.c.l.b16 %v1446
      %v1539 = vunpack.c.h.b16 %v1446
      %v1540 = vunpack.c.l.b16 %v1447
      %v1541 = vunpack.c.h.b16 %v1447
      %v1542 = vunpack.c.l.b16 %v1448
      %v1543 = vunpack.c.h.b16 %v1448
      %v1544 = vunpack.c.l.b16 %v1449
      %v1545 = vunpack.c.h.b16 %v1449
      %v1546 = vpack.c.b16 %v1482, %v1482
      %v1547 = vpack.c.b16 %v1483, %v1483
      %v1548 = vpack.c.b16 %v1484, %v1484
      %v1549 = vpack.c.b16 %v1485, %v1485
      %v1550 = vpack.c.b16 %v1486, %v1486
      %v1551 = vpack.c.b16 %v1487, %v1487
      %v1552 = vpack.c.b16 %v1488, %v1488
      %v1553 = vpack.c.b16 %v1489, %v1489
      %v1554 = vpack.c.b16 %v1490, %v1490
      %v1555 = vpack.c.b16 %v1491, %v1491
      %v1556 = vpack.c.b16 %v1492, %v1492
      %v1557 = vpack.c.b16 %v1493, %v1493
      %v1558 = vpack.c.b16 %v1494, %v1494
      %v1559 = vpack.c.b16 %v1495, %v1495
      %v1560 = vpack.c.b16 %v1496, %v1496
      %v1561 = vpack.c.b16 %v1497, %v1497
      %v1562 = vpack.c.b16 %v1498, %v1498
      %v1563 = vpack.c.b16 %v1499, %v1499
      %v1564 = vpack.c.b16 %v1500, %v1500
      %v1565 = vpack.c.b16 %v1501, %v1501
      %v1566 = vpack.c.b16 %v1502, %v1502
      %v1567 = vpack.c.b16 %v1503, %v1503
      %v1568 = vpack.c.b16 %v1504, %v1504
      %v1569 = vpack.c.b16 %v1505, %v1505
      %v1570 = vpack.c.b16 %v1506, %v1506
      %v1571 = vpack.c.b16 %v1507, %v1507
      %v1572 = vpack.c.b16 %v1508, %v1508
      %v1573 = vpack.c.b16 %v1509, %v1509
      %v1574 = vpack.c.b16 %v1510, %v1510
      %v1575 = vpack.c.b16 %v1511, %v1511
      %v1576 = vpack.c.b16 %v1512, %v1512
      %v1577 = vpack.c.b16 %v1513, %v1513
      %v1578 = vpack.c.b16 %v1514, %v1514
      %v1579 = vpack.c.b16 %v1515, %v1515
      %v1580 = vpack.c.b16 %v1516, %v1516
      %v1581 = vpack.c.b16 %v1517, %v1517
      %v1582 = vpack.c.b16 %v1518, %v1518
      %v1583 = vpack.c.b16 %v1519, %v1519
      %v1584 = vpack.c.b16 %v1520, %v1520
      %v1585 = vpack.c.b16 %v1521, %v1521
      %v1586 = vpack.c.b16 %v1522, %v1522
      %v1587 = vpack.c.b16 %v1523, %v1523
      %v1588 = vpack.c.b16 %v1524, %v1524
      %v1589 = vpack.c.b16 %v1525, %v1525
      %v1590 = vpack.c.b16 %v1526, %v1526
      %v1591 = vpack.c.b16 %v1527, %v1527
      %v1592 = vpack.c.b16 %v1528, %v1528
      %v1593 = vpack.c.b16 %v1529, %v1529
      %v1594 = vpack.c.b16 %v1530, %v1530
      %v1595 = vpack.c.b16 %v1531, %v1531
      %v1596 = vpack.c.b16 %v1532, %v1532
      %v1597 = vpack.c.b16 %v1533, %v1533
      %v1598 = vpack.c.b16 %v1534, %v1534
      %v1599 = vpack.c.b16 %v1535, %v1535
      %v1600 = vpack.c.b16 %v1536, %v1536
      %v1601 = vpack.c.b16 %v1537, %v1537
      %v1602 = vpack.c.b16 %v1538, %v1538
      %v1603 = vpack.c.b16 %v1539, %v1539
      %v1604 = vpack.c.b16 %v1540, %v1540
      %v1605 = vpack.c.b16 %v1541, %v1541
      %v1606 = vpack.c.b16 %v1542, %v1542
      %v1607 = vpack.c.b16 %v1543, %v1543
      %v1608 = vpack.c.b16 %v1544, %v1544
      %v1609 = vpack.c.b16 %v1545, %v1545
      %vm1674 = vcmask 519168
      %1675 = vst.msk [vmem:[%s199] sm:$0xf] %vm1674, %v1546
      %1676 = vst.msk [vmem:[%s199 + $0x4] sm:$0xf] %vm1674, %v1547
      %1677 = vst.msk [vmem:[%s199 + $0x8] sm:$0xf] %vm1674, %v1548
      %1678 = vst.msk [vmem:[%s199 + $0xc] sm:$0xf] %vm1674, %v1549
      %1679 = vst.msk [vmem:[%s199 + $0x10] sm:$0xf] %vm1674, %v1550
      %1680 = vst.msk [vmem:[%s199 + $0x14] sm:$0xf] %vm1674, %v1551
      %1681 = vst.msk [vmem:[%s199 + $0x18] sm:$0xf] %vm1674, %v1552
      %1682 = vst.msk [vmem:[%s199 + $0x1c] sm:$0xf] %vm1674, %v1553
      %1683 = vst.msk [vmem:[%s199 + $0x20] sm:$0xf] %vm1674, %v1554
      %1684 = vst.msk [vmem:[%s199 + $0x24] sm:$0xf] %vm1674, %v1555
      %1685 = vst.msk [vmem:[%s199 + $0x28] sm:$0xf] %vm1674, %v1556
      %1686 = vst.msk [vmem:[%s199 + $0x2c] sm:$0xf] %vm1674, %v1557
      %1687 = vst.msk [vmem:[%s199 + $0x30] sm:$0xf] %vm1674, %v1558
      %1688 = vst.msk [vmem:[%s199 + $0x34] sm:$0xf] %vm1674, %v1559
      %1689 = vst.msk [vmem:[%s199 + $0x38] sm:$0xf] %vm1674, %v1560
      %1690 = vst.msk [vmem:[%s199 + $0x3c] sm:$0xf] %vm1674, %v1561
      %1691 = vst.msk [vmem:[%s199 + $0x40] sm:$0xf] %vm1674, %v1562
      %1692 = vst.msk [vmem:[%s199 + $0x44] sm:$0xf] %vm1674, %v1563
      %1693 = vst.msk [vmem:[%s199 + $0x48] sm:$0xf] %vm1674, %v1564
      %1694 = vst.msk [vmem:[%s199 + $0x4c] sm:$0xf] %vm1674, %v1565
      %1695 = vst.msk [vmem:[%s199 + $0x50] sm:$0xf] %vm1674, %v1566
      %1696 = vst.msk [vmem:[%s199 + $0x54] sm:$0xf] %vm1674, %v1567
      %1697 = vst.msk [vmem:[%s199 + $0x58] sm:$0xf] %vm1674, %v1568
      %1698 = vst.msk [vmem:[%s199 + $0x5c] sm:$0xf] %vm1674, %v1569
      %1699 = vst.msk [vmem:[%s199 + $0x60] sm:$0xf] %vm1674, %v1570
      %1700 = vst.msk [vmem:[%s199 + $0x64] sm:$0xf] %vm1674, %v1571
      %1701 = vst.msk [vmem:[%s199 + $0x68] sm:$0xf] %vm1674, %v1572
      %1702 = vst.msk [vmem:[%s199 + $0x6c] sm:$0xf] %vm1674, %v1573
      %1703 = vst.msk [vmem:[%s199 + $0x70] sm:$0xf] %vm1674, %v1574
      %1704 = vst.msk [vmem:[%s199 + $0x74] sm:$0xf] %vm1674, %v1575
      %1705 = vst.msk [vmem:[%s199 + $0x78] sm:$0xf] %vm1674, %v1576
      %1706 = vst.msk [vmem:[%s199 + $0x7c] sm:$0xf] %vm1674, %v1577
      %1707 = vst.msk [vmem:[%s199 + $0x80] sm:$0xf] %vm1674, %v1578
      %1708 = vst.msk [vmem:[%s199 + $0x84] sm:$0xf] %vm1674, %v1579
      %1709 = vst.msk [vmem:[%s199 + $0x88] sm:$0xf] %vm1674, %v1580
      %1710 = vst.msk [vmem:[%s199 + $0x8c] sm:$0xf] %vm1674, %v1581
      %1711 = vst.msk [vmem:[%s199 + $0x90] sm:$0xf] %vm1674, %v1582
      %1712 = vst.msk [vmem:[%s199 + $0x94] sm:$0xf] %vm1674, %v1583
      %1713 = vst.msk [vmem:[%s199 + $0x98] sm:$0xf] %vm1674, %v1584
      %1714 = vst.msk [vmem:[%s199 + $0x9c] sm:$0xf] %vm1674, %v1585
      %1715 = vst.msk [vmem:[%s199 + $0xa0] sm:$0xf] %vm1674, %v1586
      %1716 = vst.msk [vmem:[%s199 + $0xa4] sm:$0xf] %vm1674, %v1587
      %1717 = vst.msk [vmem:[%s199 + $0xa8] sm:$0xf] %vm1674, %v1588
      %1718 = vst.msk [vmem:[%s199 + $0xac] sm:$0xf] %vm1674, %v1589
      %1719 = vst.msk [vmem:[%s199 + $0xb0] sm:$0xf] %vm1674, %v1590
      %1720 = vst.msk [vmem:[%s199 + $0xb4] sm:$0xf] %vm1674, %v1591
      %1721 = vst.msk [vmem:[%s199 + $0xb8] sm:$0xf] %vm1674, %v1592
      %1722 = vst.msk [vmem:[%s199 + $0xbc] sm:$0xf] %vm1674, %v1593
      %1723 = vst.msk [vmem:[%s199 + $0xc0] sm:$0xf] %vm1674, %v1594
      %1724 = vst.msk [vmem:[%s199 + $0xc4] sm:$0xf] %vm1674, %v1595
      %1725 = vst.msk [vmem:[%s199 + $0xc8] sm:$0xf] %vm1674, %v1596
      %1726 = vst.msk [vmem:[%s199 + $0xcc] sm:$0xf] %vm1674, %v1597
      %1727 = vst.msk [vmem:[%s199 + $0xd0] sm:$0xf] %vm1674, %v1598
      %1728 = vst.msk [vmem:[%s199 + $0xd4] sm:$0xf] %vm1674, %v1599
      %1729 = vst.msk [vmem:[%s199 + $0xd8] sm:$0xf] %vm1674, %v1600
      %1730 = vst.msk [vmem:[%s199 + $0xdc] sm:$0xf] %vm1674, %v1601
      %1731 = vst.msk [vmem:[%s199 + $0xe0] sm:$0xf] %vm1674, %v1602
      %1732 = vst.msk [vmem:[%s199 + $0xe4] sm:$0xf] %vm1674, %v1603
      %1733 = vst.msk [vmem:[%s199 + $0xe8] sm:$0xf] %vm1674, %v1604
      %1734 = vst.msk [vmem:[%s199 + $0xec] sm:$0xf] %vm1674, %v1605
      %1735 = vst.msk [vmem:[%s199 + $0xf0] sm:$0xf] %vm1674, %v1606
      %1736 = vst.msk [vmem:[%s199 + $0xf4] sm:$0xf] %vm1674, %v1607
      %1737 = vst.msk [vmem:[%s199 + $0xf8] sm:$0xf] %vm1674, %v1608
      %1738 = vst.msk [vmem:[%s199 + $0xfc] sm:$0xf] %vm1674, %v1609
      %s1739 = smul.u32 64, %s15
      %p1740 = scmp.lt.s32.totalorder %s1739, 255
      %s1741 = scalar_select %p1740, %s1739, 255
      %s1742 = smul.addr %s1741, 4
      %s1743 = scalar_lea.vmem %s4, %s1742
      // Predicated region
      $region37: #{pointwise.1} parent=35 // pred_check
        %p1744 = pneg %p122
      $region38: #{pointwise.1} parent=35 // pred_check_branch
        %1746 = sbr.rel (%p1744) target = $region40
      $region39: #{pointwise.1} parent=35 // pred_region
        %s1747 = smul.u32 64, %s15
      $region40: #{pointwise.1} parent=35 // pred_fallthru
        _
    $region36: #{pointwise.1} parent=5 // pred_fallthru
      _
    %p1748 = scmp.le.s32.totalorder 2, %s10
    // Predicated region
    $region41: #{pointwise.1} parent=5 // pred_check
      %p1749 = pneg %p1748
    $region42: #{pointwise.1} parent=5 // pred_check_branch
      %1751 = sbr.rel (%p1749) target = $region44
    $region43: #{pointwise.1} parent=5 // pred_region
      %s1752 = ssub.s32 %s10, 2
      // Predicated region
      $region45: #{pointwise.1} parent=43 // pred_check
        %p1753 = pneg %p128
      $region46: #{pointwise.1} parent=43 // pred_check_branch
        %1755 = sbr.rel (%p1753) target = $region48
      $region47: #{pointwise.1} parent=43 // pred_region
        %s1756 = smul.u32 64, %s16
        %p1757 = scmp.lt.s32.totalorder %s1756, 255
        %s1758 = scalar_select %p1757, %s1756, 255
        %s1759 = smul.addr %s1758, 4
        %s1760 = scalar_lea.vmem %s4, %s1759
      $region48: #{pointwise.1} parent=43 // pred_fallthru
        _
    $region44: #{pointwise.1} parent=5 // pred_fallthru
      _
  $region6: #{pointwise.1} parent=0 // loop_footer
    %s14 = sadd.s32 1, %s10
  $region7: #{pointwise.1} parent=0 // loop_footer_branch
    %9 = sbr.rel target = $region3
  $region8: #{pointwise.1} parent=0 // loop_exit
    _

</llo_original>
